<compile_context>
chip_gen: v5e
topology: v5e:2x2
jax: 0.10.0
libtpu: 0.0.40
codegen_flags: <defaults>
</compile_context>

<pallas_src>
import jax
import jax.numpy as jnp
from jax.experimental import pallas as pl
from jax.experimental.pallas import tpu as pltpu

LANE = 128          # pad all channel / feature output dims to the vreg lane width
NEG_INF = -1e30     # masks padded class lanes inside log_softmax


# ----------------------------------------------------------------------------
# Pallas kernels
# ----------------------------------------------------------------------------
def _conv_pool_relu_kernel(p00_ref, p01_ref, p10_ref, p11_ref, w_ref, b_ref,
                           o_ref):
    """Fused conv (im2col matmul) + bias + 2x2 max-pool + ReLU.

    Each p??_ref holds im2col patches for one of the four positions of the 2x2
    pooling window: (TILE_M, K) with K = k*k*Cin.  w_ref is (K, 128), b_ref is
    (1, 128); the output block (TILE_M, 128) is lane-dense.
    """
    w = w_ref[...]
    y00 = jnp.dot(p00_ref[...], w, preferred_element_type=jnp.float32)
    y01 = jnp.dot(p01_ref[...], w, preferred_element_type=jnp.float32)
    y10 = jnp.dot(p10_ref[...], w, preferred_element_type=jnp.float32)
    y11 = jnp.dot(p11_ref[...], w, preferred_element_type=jnp.float32)
    y = jnp.maximum(jnp.maximum(y00, y01), jnp.maximum(y10, y11))
    y = jnp.maximum(y + b_ref[...], 0.0)          # bias commutes with the max
    o_ref[...] = y.astype(o_ref.dtype)


def _fc_tail_kernel(x_ref, w1_ref, b1_ref, w2_ref, b2_ref, o_ref):
    """Fused fc1 + ReLU + fc2 + log_softmax (dropout = identity in eval)."""
    h = jnp.dot(x_ref[...], w1_ref[...], preferred_element_type=jnp.float32)
    h = jnp.maximum(h + b1_ref[...], 0.0)                        # (TILE, 128)
    z = jnp.dot(h, w2_ref[...], preferred_element_type=jnp.float32)
    z = z + b2_ref[...]           # padded class lanes carry -1e30 -> exp == 0
    m = jnp.max(z, axis=-1, keepdims=True)
    zs = z - m
    lse = jnp.log(jnp.sum(jnp.exp(zs), axis=-1, keepdims=True))
    o_ref[...] = (zs - lse).astype(o_ref.dtype)


# ----------------------------------------------------------------------------
# Wrappers
# ----------------------------------------------------------------------------
def _row_block(m, target):
    """Largest divisor of m that is <= target and a multiple of 8, else m."""
    if m <= target:
        return m
    for d in range(target, 0, -1):
        if m % d == 0 and d % 8 == 0:
            return d
    return m


def conv_pool_relu(x, w2d, b2d, k):
    """x: (N, H, W, C) -> relu(maxpool2(conv(x) + b)) as (N*P*Q, 128)."""
    N, H, W, C = x.shape
    Ho, Wo = H - k + 1, W - k + 1
    P, Q = Ho // 2, Wo // 2
    K = k * k * C

    # XLA-side glue: four pool-offset im2col matrices, column order (di, dj, c)
    # matching the prepared weight layout.
    # TODO(synk): move this gather fully in-kernel (strided pl.ds reads) to cut
    # the k*k HBM expansion at large batch; at these sizes it is pure glue.
    mats = []
    for pi in range(2):
        for pj in range(2):
            cols = [x[:, pi + di:pi + di + 2 * P:2,
                        pj + dj:pj + dj + 2 * Q:2, :]
                    for di in range(k) for dj in range(k)]    # k*k x (N,P,Q,C)
            pm = jnp.stack(cols, axis=3)                       # (N,P,Q,k*k,C)
            mats.append(pm.reshape(N * P * Q, K))

    M = N * P * Q
    blk = _row_block(M, 1024)
    grid = (M // blk,)
    patch_spec = pl.BlockSpec((blk, K), lambda i: (i, 0))
    out = pl.pallas_call(
        _conv_pool_relu_kernel,
        out_shape=jax.ShapeDtypeStruct((M, LANE), jnp.float32),
        grid=grid,
        in_specs=[patch_spec, patch_spec, patch_spec, patch_spec,
                  pl.BlockSpec((K, LANE), lambda i: (0, 0)),
                  pl.BlockSpec((1, LANE), lambda i: (0, 0))],
        out_specs=pl.BlockSpec((blk, LANE), lambda i: (i, 0)),
        compiler_params=pltpu.CompilerParams(
            dimension_semantics=("parallel",)),
        cost_estimate=pl.CostEstimate(
            flops=2 * 4 * M * K * LANE,
            transcendentals=0,
            bytes_accessed=4 * (4 * M * K + K * LANE + LANE + M * LANE)),
    )(*mats, w2d, b2d)
    return out, (N, P, Q)


def fc_tail(x2, w1, b1, w2, b2):
    """x2: (N, 2048) -> log_softmax(fc2(relu(fc1(x2)))) padded to (N, 128)."""
    M, K = x2.shape
    blk = _row_block(M, 512)
    grid = (M // blk,)
    return pl.pallas_call(
        _fc_tail_kernel,
        out_shape=jax.ShapeDtypeStruct((M, LANE), jnp.float32),
        grid=grid,
        in_specs=[pl.BlockSpec((blk, K), lambda i: (i, 0)),
                  pl.BlockSpec((K, LANE), lambda i: (0, 0)),
                  pl.BlockSpec((1, LANE), lambda i: (0, 0)),
                  pl.BlockSpec((LANE, LANE), lambda i: (0, 0)),
                  pl.BlockSpec((1, LANE), lambda i: (0, 0))],
        out_specs=pl.BlockSpec((blk, LANE), lambda i: (i, 0)),
        compiler_params=pltpu.CompilerParams(
            dimension_semantics=("parallel",)),
        cost_estimate=pl.CostEstimate(
            flops=2 * M * (K * LANE + LANE * LANE),
            transcendentals=M * LANE,
            bytes_accessed=4 * (M * K + K * LANE + LANE * LANE + M * LANE)),
    )(x2, w1, b1, w2, b2)


# ----------------------------------------------------------------------------
# Parameters
# ----------------------------------------------------------------------------
def init_params(key):
    """PyTorch-style uniform(-1/sqrt(fan_in), 1/sqrt(fan_in)) init, torch layouts."""
    def uni(k, shape, fan_in):
        bound = 1.0 / jnp.sqrt(jnp.float32(fan_in))
        return jax.random.uniform(k, shape, jnp.float32, -bound, bound)

    ks = jax.random.split(key, 8)
    return {
        "conv1_w": uni(ks[0], (10, 1, 5, 5), 1 * 5 * 5),
        "conv1_b": uni(ks[1], (10,), 1 * 5 * 5),
        "conv2_w": uni(ks[2], (20, 10, 5, 5), 10 * 5 * 5),
        "conv2_b": uni(ks[3], (20,), 10 * 5 * 5),
        "fc1_w": uni(ks[4], (50, 320), 320),   # (out, in) like torch.nn.Linear
        "fc1_b": uni(ks[5], (50,), 320),
        "fc2_w": uni(ks[6], (10, 50), 50),
        "fc2_b": uni(ks[7], (10,), 50),
    }


def prepare_params(p):
    """One-time conversion of torch-layout params into kernel-ready operands."""
    def pad_lanes(a, width=LANE):
        return jnp.pad(a, [(0, 0)] * (a.ndim - 1) + [(0, width - a.shape[-1])])

    # conv weights: (O, C, k, k) -> (k*k*C, O), pad O -> 128; column order (di,dj,c)
    w1c = pad_lanes(p["conv1_w"].transpose(2, 3, 1, 0).reshape(25 * 1, 10))
    w2c = pad_lanes(p["conv2_w"].transpose(2, 3, 1, 0).reshape(25 * 10, 20))
    b1c = pad_lanes(p["conv1_b"].reshape(1, 10))
    b2c = pad_lanes(p["conv2_b"].reshape(1, 20))

    # fc1: permute its 320 input columns from torch's (c, h, w) flatten order to
    # our (h, w, c_pad=128) flatten order; pad hidden 50 -> 128.
    w1f = p["fc1_w"].reshape(50, 20, 4, 4).transpose(2, 3, 1, 0)   # (4,4,20,50)
    w1f = jnp.pad(w1f, ((0, 0), (0, 0), (0, LANE - 20), (0, 0)))   # (4,4,128,50)
    w1f = pad_lanes(w1f.reshape(4 * 4 * LANE, 50))                 # (2048, 128)
    b1f = pad_lanes(p["fc1_b"].reshape(1, 50))

    # fc2: (10, 50) -> (50, 10), zero-pad in 50->128 and out 10->128.
    w2f = jnp.pad(p["fc2_w"].T, ((0, LANE - 50), (0, LANE - 10)))  # (128, 128)
    # padded class lanes get a huge negative bias so log_softmax ignores them
    b2f = jnp.concatenate(
        [p["fc2_b"], jnp.full((LANE - 10,), NEG_INF, jnp.float32)]).reshape(1, LANE)

    return {"w1c": w1c, "b1c": b1c, "w2c": w2c, "b2c": b2c,
            "w1f": w1f, "b1f": b1f, "w2f": w2f, "b2f": b2f}


# ----------------------------------------------------------------------------
# Model forward
# ----------------------------------------------------------------------------
def mnist_classifier_forward(prep, x):
    """x: (N, 1, 28, 28) float32 (NCHW, Cin=1) -> (N, 10) log-probabilities."""
    N = x.shape[0]
    x = x.reshape(N, 28, 28, 1)                  # Cin=1: free relabel to NHWC

    # relu(max_pool2d(conv1(x), 2)) — one fused kernel, lane-dense output
    a1, _ = conv_pool_relu(x, prep["w1c"], prep["b1c"], k=5)     # (N*144, 128)
    a1 = a1.reshape(N, 12, 12, LANE)[..., :10]                   # (N,12,12,10)

    # relu(max_pool2d(conv2_drop(conv2(a1)), 2)); Dropout2d = identity (eval)
    a2, _ = conv_pool_relu(a1, prep["w2c"], prep["b2c"], k=5)    # (N*16, 128)

    # x.view(-1, 320) is absorbed into fc1's permuted / padded weight columns
    x2 = a2.reshape(N, 4 * 4 * LANE)                             # free bitcast

    # relu(fc1) -> dropout(identity, eval) -> fc2 -> log_softmax, one kernel
    out = fc_tail(x2, prep["w1f"], prep["b1f"], prep["w2f"], prep["b2f"])
    return out[:, :10]


if __name__ == "__main__":
    key = jax.random.PRNGKey(0)
    k_param, k_x = jax.random.split(key)
    params = init_params(k_param)
    prep = prepare_params(params)                # one-time weight preparation
    x = jax.random.normal(k_x, (2, 1, 28, 28), dtype=jnp.float32)

    out = jax.jit(mnist_classifier_forward)(prep, x)
    out = jax.block_until_ready(out)
    assert out.shape == (2, 10)
    # sanity: rows of exp(log_softmax) should sum to ~1 and be finite
    assert jnp.allclose(jnp.exp(out).sum(-1), 1.0, atol=1e-4)
    assert bool(jnp.all(jnp.isfinite(out)))
    print("KERNEL_OK")
</pallas_src>

<mosaic_0001>
module attributes {stable_mosaic.version = 11 : i64} {
  func.func @_conv_pool_relu_kernel(%arg0: i32, %arg1: memref<288x25xf32, #tpu.memory_space<vmem>>, %arg2: memref<288x25xf32, #tpu.memory_space<vmem>>, %arg3: memref<288x25xf32, #tpu.memory_space<vmem>>, %arg4: memref<288x25xf32, #tpu.memory_space<vmem>>, %arg5: memref<25x128xf32, #tpu.memory_space<vmem>>, %arg6: memref<1x128xf32, #tpu.memory_space<vmem>>, %arg7: memref<288x128xf32, #tpu.memory_space<vmem>>) attributes {dimension_semantics = [#tpu.dimension_semantics<parallel>], iteration_bounds = array<i64: 1>, scalar_prefetch = 0 : i64, scratch_operands = 0 : i64, tpu.core_type = #tpu.core_type<tc>, window_params = [{transform_indices = @transform_0, window_bounds = array<i64: 288, 25>}, {transform_indices = @transform_1, window_bounds = array<i64: 288, 25>}, {transform_indices = @transform_2, window_bounds = array<i64: 288, 25>}, {transform_indices = @transform_3, window_bounds = array<i64: 288, 25>}, {pipeline_mode = #tpu.pipeline_mode<synchronous>, transform_indices = @transform_4, window_bounds = array<i64: 25, 128>}, {pipeline_mode = #tpu.pipeline_mode<synchronous>, transform_indices = @transform_5, window_bounds = array<i64: 1, 128>}, {transform_indices = @transform_6, window_bounds = array<i64: 288, 128>}]} {
    %c0 = arith.constant 0 : index
    %c0_0 = arith.constant 0 : index
    %0 = vector.load %arg5[%c0, %c0_0] : memref<25x128xf32, #tpu.memory_space<vmem>>, vector<25x128xf32>
    %c0_1 = arith.constant 0 : index
    %c0_2 = arith.constant 0 : index
    %1 = vector.load %arg1[%c0_1, %c0_2] : memref<288x25xf32, #tpu.memory_space<vmem>>, vector<288x25xf32>
    %cst = arith.constant dense<0.000000e+00> : vector<288x128xf32>
    %2 = tpu.matmul %1, %0, %cst {dimension_numbers = #tpu.dot_dimension_numbers<[1], [0], [0], [1], [0, 0, 1, 1], [], []>} : vector<288x25xf32>, vector<25x128xf32>, vector<288x128xf32> -> vector<288x128xf32>
    %c0_3 = arith.constant 0 : index
    %c0_4 = arith.constant 0 : index
    %3 = vector.load %arg2[%c0_3, %c0_4] : memref<288x25xf32, #tpu.memory_space<vmem>>, vector<288x25xf32>
    %cst_5 = arith.constant dense<0.000000e+00> : vector<288x128xf32>
    %4 = tpu.matmul %3, %0, %cst_5 {dimension_numbers = #tpu.dot_dimension_numbers<[1], [0], [0], [1], [0, 0, 1, 1], [], []>} : vector<288x25xf32>, vector<25x128xf32>, vector<288x128xf32> -> vector<288x128xf32>
    %c0_6 = arith.constant 0 : index
    %c0_7 = arith.constant 0 : index
    %5 = vector.load %arg3[%c0_6, %c0_7] : memref<288x25xf32, #tpu.memory_space<vmem>>, vector<288x25xf32>
    %cst_8 = arith.constant dense<0.000000e+00> : vector<288x128xf32>
    %6 = tpu.matmul %5, %0, %cst_8 {dimension_numbers = #tpu.dot_dimension_numbers<[1], [0], [0], [1], [0, 0, 1, 1], [], []>} : vector<288x25xf32>, vector<25x128xf32>, vector<288x128xf32> -> vector<288x128xf32>
    %c0_9 = arith.constant 0 : index
    %c0_10 = arith.constant 0 : index
    %7 = vector.load %arg4[%c0_9, %c0_10] : memref<288x25xf32, #tpu.memory_space<vmem>>, vector<288x25xf32>
    %cst_11 = arith.constant dense<0.000000e+00> : vector<288x128xf32>
    %8 = tpu.matmul %7, %0, %cst_11 {dimension_numbers = #tpu.dot_dimension_numbers<[1], [0], [0], [1], [0, 0, 1, 1], [], []>} : vector<288x25xf32>, vector<25x128xf32>, vector<288x128xf32> -> vector<288x128xf32>
    %9 = arith.maximumf %2, %4 : vector<288x128xf32>
    %10 = arith.maximumf %6, %8 : vector<288x128xf32>
    %11 = arith.maximumf %9, %10 : vector<288x128xf32>
    %c0_12 = arith.constant 0 : index
    %c0_13 = arith.constant 0 : index
    %12 = vector.load %arg6[%c0_12, %c0_13] : memref<1x128xf32, #tpu.memory_space<vmem>>, vector<1x128xf32>
    %13 = vector.broadcast %12 : vector<1x128xf32> to vector<288x128xf32>
    %14 = arith.addf %11, %13 : vector<288x128xf32>
    %cst_14 = arith.constant 0.000000e+00 : f32
    %15 = vector.broadcast %cst_14 : f32 to vector<288x128xf32>
    %16 = arith.maximumf %14, %15 : vector<288x128xf32>
    %c0_15 = arith.constant 0 : index
    %c0_16 = arith.constant 0 : index
    %17 = vector.load %arg7[%c0_15, %c0_16] : memref<288x128xf32, #tpu.memory_space<vmem>>, vector<288x128xf32>
    tpu.vector_store %arg7[%c0_15, %c0_16], %16 {strides = array<i32>} : memref<288x128xf32, #tpu.memory_space<vmem>>, vector<288x128xf32>,
    return
  }
  func.func @transform_0(%arg0: i32) -> (i32, i32) {
    %c0_i32 = arith.constant 0 : i32
    %c0_i32_0 = arith.constant 0 : i32
    return %arg0, %c0_i32 : i32, i32
  }
  func.func @transform_1(%arg0: i32) -> (i32, i32) {
    %c0_i32 = arith.constant 0 : i32
    %c0_i32_0 = arith.constant 0 : i32
    return %arg0, %c0_i32 : i32, i32
  }
  func.func @transform_2(%arg0: i32) -> (i32, i32) {
    %c0_i32 = arith.constant 0 : i32
    %c0_i32_0 = arith.constant 0 : i32
    return %arg0, %c0_i32 : i32, i32
  }
  func.func @transform_3(%arg0: i32) -> (i32, i32) {
    %c0_i32 = arith.constant 0 : i32
    %c0_i32_0 = arith.constant 0 : i32
    return %arg0, %c0_i32 : i32, i32
  }
  func.func @transform_4(%arg0: i32) -> (i32, i32) {
    %c0_i32 = arith.constant 0 : i32
    %c0_i32_0 = arith.constant 0 : i32
    %c0_i32_1 = arith.constant 0 : i32
    return %c0_i32, %c0_i32_0 : i32, i32
  }
  func.func @transform_5(%arg0: i32) -> (i32, i32) {
    %c0_i32 = arith.constant 0 : i32
    %c0_i32_0 = arith.constant 0 : i32
    %c0_i32_1 = arith.constant 0 : i32
    return %c0_i32, %c0_i32_0 : i32, i32
  }
  func.func @transform_6(%arg0: i32) -> (i32, i32) {
    %c0_i32 = arith.constant 0 : i32
    %c0_i32_0 = arith.constant 0 : i32
    return %arg0, %c0_i32 : i32, i32
  }
}

module attributes {stable_mosaic.version = 11 : i64} {
  func.func @_fc_tail_kernel(%arg0: i32, %arg1: memref<2x2048xf32, #tpu.memory_space<vmem>>, %arg2: memref<2048x128xf32, #tpu.memory_space<vmem>>, %arg3: memref<1x128xf32, #tpu.memory_space<vmem>>, %arg4: memref<128x128xf32, #tpu.memory_space<vmem>>, %arg5: memref<1x128xf32, #tpu.memory_space<vmem>>, %arg6: memref<2x128xf32, #tpu.memory_space<vmem>>) attributes {dimension_semantics = [#tpu.dimension_semantics<parallel>], iteration_bounds = array<i64: 1>, scalar_prefetch = 0 : i64, scratch_operands = 0 : i64, tpu.core_type = #tpu.core_type<tc>, window_params = [{transform_indices = @transform_0, window_bounds = array<i64: 2, 2048>}, {pipeline_mode = #tpu.pipeline_mode<synchronous>, transform_indices = @transform_1, window_bounds = array<i64: 2048, 128>}, {pipeline_mode = #tpu.pipeline_mode<synchronous>, transform_indices = @transform_2, window_bounds = array<i64: 1, 128>}, {pipeline_mode = #tpu.pipeline_mode<synchronous>, transform_indices = @transform_3, window_bounds = array<i64: 128, 128>}, {pipeline_mode = #tpu.pipeline_mode<synchronous>, transform_indices = @transform_4, window_bounds = array<i64: 1, 128>}, {transform_indices = @transform_5, window_bounds = array<i64: 2, 128>}]} {
    %c0 = arith.constant 0 : index
    %c0_0 = arith.constant 0 : index
    %0 = vector.load %arg1[%c0, %c0_0] : memref<2x2048xf32, #tpu.memory_space<vmem>>, vector<2x2048xf32>
    %c0_1 = arith.constant 0 : index
    %c0_2 = arith.constant 0 : index
    %1 = vector.load %arg2[%c0_1, %c0_2] : memref<2048x128xf32, #tpu.memory_space<vmem>>, vector<2048x128xf32>
    %cst = arith.constant dense<0.000000e+00> : vector<2x128xf32>
    %2 = tpu.matmul %0, %1, %cst {dimension_numbers = #tpu.dot_dimension_numbers<[1], [0], [0], [1], [0, 0, 1, 1], [], []>} : vector<2x2048xf32>, vector<2048x128xf32>, vector<2x128xf32> -> vector<2x128xf32>
    %c0_3 = arith.constant 0 : index
    %c0_4 = arith.constant 0 : index
    %3 = vector.load %arg3[%c0_3, %c0_4] : memref<1x128xf32, #tpu.memory_space<vmem>>, vector<1x128xf32>
    %4 = vector.broadcast %3 : vector<1x128xf32> to vector<2x128xf32>
    %5 = arith.addf %2, %4 : vector<2x128xf32>
    %cst_5 = arith.constant 0.000000e+00 : f32
    %6 = vector.broadcast %cst_5 : f32 to vector<2x128xf32>
    %7 = arith.maximumf %5, %6 : vector<2x128xf32>
    %c0_6 = arith.constant 0 : index
    %c0_7 = arith.constant 0 : index
    %8 = vector.load %arg4[%c0_6, %c0_7] : memref<128x128xf32, #tpu.memory_space<vmem>>, vector<128x128xf32>
    %cst_8 = arith.constant dense<0.000000e+00> : vector<2x128xf32>
    %9 = tpu.matmul %7, %8, %cst_8 {dimension_numbers = #tpu.dot_dimension_numbers<[1], [0], [0], [1], [0, 0, 1, 1], [], []>} : vector<2x128xf32>, vector<128x128xf32>, vector<2x128xf32> -> vector<2x128xf32>
    %c0_9 = arith.constant 0 : index
    %c0_10 = arith.constant 0 : index
    %10 = vector.load %arg5[%c0_9, %c0_10] : memref<1x128xf32, #tpu.memory_space<vmem>>, vector<1x128xf32>
    %11 = vector.broadcast %10 : vector<1x128xf32> to vector<2x128xf32>
    %12 = arith.addf %9, %11 : vector<2x128xf32>
    %cst_11 = arith.constant dense<0xFF800000> : vector<2xf32>
    %13 = vector.multi_reduction <maximumf>, %12, %cst_11 [1] : vector<2x128xf32> to vector<2xf32>
    %14 = vector.shape_cast %13 : vector<2xf32> to vector<2x1xf32>
    %15 = vector.broadcast %14 : vector<2x1xf32> to vector<2x128xf32>
    %16 = arith.subf %12, %15 : vector<2x128xf32>
    %17 = math.exp %16 : vector<2x128xf32>
    %cst_12 = arith.constant dense<0.000000e+00> : vector<2xf32>
    %18 = vector.multi_reduction <add>, %17, %cst_12 [1] : vector<2x128xf32> to vector<2xf32>
    %19 = vector.shape_cast %18 : vector<2xf32> to vector<2x1xf32>
    %20 = math.log %19 : vector<2x1xf32>
    %21 = vector.broadcast %20 : vector<2x1xf32> to vector<2x128xf32>
    %22 = arith.subf %16, %21 : vector<2x128xf32>
    %c0_13 = arith.constant 0 : index
    %c0_14 = arith.constant 0 : index
    %23 = vector.load %arg6[%c0_13, %c0_14] : memref<2x128xf32, #tpu.memory_space<vmem>>, vector<2x128xf32>
    tpu.vector_store %arg6[%c0_13, %c0_14], %22 {strides = array<i32>} : memref<2x128xf32, #tpu.memory_space<vmem>>, vector<2x128xf32>,
    return
  }
  func.func @transform_0(%arg0: i32) -> (i32, i32) {
    %c0_i32 = arith.constant 0 : i32
    %c0_i32_0 = arith.constant 0 : i32
    return %arg0, %c0_i32 : i32, i32
  }
  func.func @transform_1(%arg0: i32) -> (i32, i32) {
    %c0_i32 = arith.constant 0 : i32
    %c0_i32_0 = arith.constant 0 : i32
    %c0_i32_1 = arith.constant 0 : i32
    return %c0_i32, %c0_i32_0 : i32, i32
  }
  func.func @transform_2(%arg0: i32) -> (i32, i32) {
    %c0_i32 = arith.constant 0 : i32
    %c0_i32_0 = arith.constant 0 : i32
    %c0_i32_1 = arith.constant 0 : i32
    return %c0_i32, %c0_i32_0 : i32, i32
  }
  func.func @transform_3(%arg0: i32) -> (i32, i32) {
    %c0_i32 = arith.constant 0 : i32
    %c0_i32_0 = arith.constant 0 : i32
    %c0_i32_1 = arith.constant 0 : i32
    return %c0_i32, %c0_i32_0 : i32, i32
  }
  func.func @transform_4(%arg0: i32) -> (i32, i32) {
    %c0_i32 = arith.constant 0 : i32
    %c0_i32_0 = arith.constant 0 : i32
    %c0_i32_1 = arith.constant 0 : i32
    return %c0_i32, %c0_i32_0 : i32, i32
  }
  func.func @transform_5(%arg0: i32) -> (i32, i32) {
    %c0_i32 = arith.constant 0 : i32
    %c0_i32_0 = arith.constant 0 : i32
    return %arg0, %c0_i32 : i32, i32
  }
}

module attributes {stable_mosaic.version = 11 : i64} {
  func.func @_conv_pool_relu_kernel(%arg0: i32, %arg1: memref<32x250xf32, #tpu.memory_space<vmem>>, %arg2: memref<32x250xf32, #tpu.memory_space<vmem>>, %arg3: memref<32x250xf32, #tpu.memory_space<vmem>>, %arg4: memref<32x250xf32, #tpu.memory_space<vmem>>, %arg5: memref<250x128xf32, #tpu.memory_space<vmem>>, %arg6: memref<1x128xf32, #tpu.memory_space<vmem>>, %arg7: memref<32x128xf32, #tpu.memory_space<vmem>>) attributes {dimension_semantics = [#tpu.dimension_semantics<parallel>], iteration_bounds = array<i64: 1>, scalar_prefetch = 0 : i64, scratch_operands = 0 : i64, tpu.core_type = #tpu.core_type<tc>, window_params = [{transform_indices = @transform_0, window_bounds = array<i64: 32, 250>}, {transform_indices = @transform_1, window_bounds = array<i64: 32, 250>}, {transform_indices = @transform_2, window_bounds = array<i64: 32, 250>}, {transform_indices = @transform_3, window_bounds = array<i64: 32, 250>}, {pipeline_mode = #tpu.pipeline_mode<synchronous>, transform_indices = @transform_4, window_bounds = array<i64: 250, 128>}, {pipeline_mode = #tpu.pipeline_mode<synchronous>, transform_indices = @transform_5, window_bounds = array<i64: 1, 128>}, {transform_indices = @transform_6, window_bounds = array<i64: 32, 128>}]} {
    %c0 = arith.constant 0 : index
    %c0_0 = arith.constant 0 : index
    %0 = vector.load %arg5[%c0, %c0_0] : memref<250x128xf32, #tpu.memory_space<vmem>>, vector<250x128xf32>
    %c0_1 = arith.constant 0 : index
    %c0_2 = arith.constant 0 : index
    %1 = vector.load %arg1[%c0_1, %c0_2] : memref<32x250xf32, #tpu.memory_space<vmem>>, vector<32x250xf32>
    %cst = arith.constant dense<0.000000e+00> : vector<32x128xf32>
    %2 = tpu.matmul %1, %0, %cst {dimension_numbers = #tpu.dot_dimension_numbers<[1], [0], [0], [1], [0, 0, 1, 1], [], []>} : vector<32x250xf32>, vector<250x128xf32>, vector<32x128xf32> -> vector<32x128xf32>
    %c0_3 = arith.constant 0 : index
    %c0_4 = arith.constant 0 : index
    %3 = vector.load %arg2[%c0_3, %c0_4] : memref<32x250xf32, #tpu.memory_space<vmem>>, vector<32x250xf32>
    %cst_5 = arith.constant dense<0.000000e+00> : vector<32x128xf32>
    %4 = tpu.matmul %3, %0, %cst_5 {dimension_numbers = #tpu.dot_dimension_numbers<[1], [0], [0], [1], [0, 0, 1, 1], [], []>} : vector<32x250xf32>, vector<250x128xf32>, vector<32x128xf32> -> vector<32x128xf32>
    %c0_6 = arith.constant 0 : index
    %c0_7 = arith.constant 0 : index
    %5 = vector.load %arg3[%c0_6, %c0_7] : memref<32x250xf32, #tpu.memory_space<vmem>>, vector<32x250xf32>
    %cst_8 = arith.constant dense<0.000000e+00> : vector<32x128xf32>
    %6 = tpu.matmul %5, %0, %cst_8 {dimension_numbers = #tpu.dot_dimension_numbers<[1], [0], [0], [1], [0, 0, 1, 1], [], []>} : vector<32x250xf32>, vector<250x128xf32>, vector<32x128xf32> -> vector<32x128xf32>
    %c0_9 = arith.constant 0 : index
    %c0_10 = arith.constant 0 : index
    %7 = vector.load %arg4[%c0_9, %c0_10] : memref<32x250xf32, #tpu.memory_space<vmem>>, vector<32x250xf32>
    %cst_11 = arith.constant dense<0.000000e+00> : vector<32x128xf32>
    %8 = tpu.matmul %7, %0, %cst_11 {dimension_numbers = #tpu.dot_dimension_numbers<[1], [0], [0], [1], [0, 0, 1, 1], [], []>} : vector<32x250xf32>, vector<250x128xf32>, vector<32x128xf32> -> vector<32x128xf32>
    %9 = arith.maximumf %2, %4 : vector<32x128xf32>
    %10 = arith.maximumf %6, %8 : vector<32x128xf32>
    %11 = arith.maximumf %9, %10 : vector<32x128xf32>
    %c0_12 = arith.constant 0 : index
    %c0_13 = arith.constant 0 : index
    %12 = vector.load %arg6[%c0_12, %c0_13] : memref<1x128xf32, #tpu.memory_space<vmem>>, vector<1x128xf32>
    %13 = vector.broadcast %12 : vector<1x128xf32> to vector<32x128xf32>
    %14 = arith.addf %11, %13 : vector<32x128xf32>
    %cst_14 = arith.constant 0.000000e+00 : f32
    %15 = vector.broadcast %cst_14 : f32 to vector<32x128xf32>
    %16 = arith.maximumf %14, %15 : vector<32x128xf32>
    %c0_15 = arith.constant 0 : index
    %c0_16 = arith.constant 0 : index
    %17 = vector.load %arg7[%c0_15, %c0_16] : memref<32x128xf32, #tpu.memory_space<vmem>>, vector<32x128xf32>
    tpu.vector_store %arg7[%c0_15, %c0_16], %16 {strides = array<i32>} : memref<32x128xf32, #tpu.memory_space<vmem>>, vector<32x128xf32>,
    return
  }
  func.func @transform_0(%arg0: i32) -> (i32, i32) {
    %c0_i32 = arith.constant 0 : i32
    %c0_i32_0 = arith.constant 0 : i32
    return %arg0, %c0_i32 : i32, i32
  }
  func.func @transform_1(%arg0: i32) -> (i32, i32) {
    %c0_i32 = arith.constant 0 : i32
    %c0_i32_0 = arith.constant 0 : i32
    return %arg0, %c0_i32 : i32, i32
  }
  func.func @transform_2(%arg0: i32) -> (i32, i32) {
    %c0_i32 = arith.constant 0 : i32
    %c0_i32_0 = arith.constant 0 : i32
    return %arg0, %c0_i32 : i32, i32
  }
  func.func @transform_3(%arg0: i32) -> (i32, i32) {
    %c0_i32 = arith.constant 0 : i32
    %c0_i32_0 = arith.constant 0 : i32
    return %arg0, %c0_i32 : i32, i32
  }
  func.func @transform_4(%arg0: i32) -> (i32, i32) {
    %c0_i32 = arith.constant 0 : i32
    %c0_i32_0 = arith.constant 0 : i32
    %c0_i32_1 = arith.constant 0 : i32
    return %c0_i32, %c0_i32_0 : i32, i32
  }
  func.func @transform_5(%arg0: i32) -> (i32, i32) {
    %c0_i32 = arith.constant 0 : i32
    %c0_i32_0 = arith.constant 0 : i32
    %c0_i32_1 = arith.constant 0 : i32
    return %c0_i32, %c0_i32_0 : i32, i32
  }
  func.func @transform_6(%arg0: i32) -> (i32, i32) {
    %c0_i32 = arith.constant 0 : i32
    %c0_i32_0 = arith.constant 0 : i32
    return %arg0, %c0_i32 : i32, i32
  }
}

</mosaic_0001>

<llo_original>
// kernel: mnist_classifier_forward.3
$region0: #{mnist_classifier_forward.3}
  #allocation0 [shape = 'u32[]', space=smem, size = 0x4, offset = 0x4, fixed_abs, tag = 'smem constant byte address 0x4 - core index']
  #allocation1 [shape = 'u32[72,128]{1,0:T(1,128)}', space=vmem, size = 0x9000, scoped, tag = 'internal scratch']
  %s0 = inlined_call_operand.vmem [shape: f32[288,25], index: 0, kind: input, shape index: {}]
  %s1 = inlined_call_operand.vmem [shape: f32[288,25], index: 1, kind: input, shape index: {}]
  %s2 = inlined_call_operand.vmem [shape: f32[288,25], index: 2, kind: input, shape index: {}]
  %s3 = inlined_call_operand.vmem [shape: f32[288,25], index: 3, kind: input, shape index: {}]
  %s4 = inlined_call_operand.vmem [shape: f32[25,128], index: 4, kind: input, shape index: {}]
  %s5 = inlined_call_operand.vmem [shape: f32[1,128], index: 5, kind: input, shape index: {}]
  %s6 = inlined_call_operand.vmem [shape: f32[288,128], index: 6, kind: output, shape index: {}]
  %s7 = sld [smem:[#allocation0]]
  $region34: #{mnist_classifier_forward.3} parent=0
    _
  %s9 = ssub.s32 1, %s7
  %s10 = scalar_select 0, %s9, %s7
  // Predicated region
  $region2: #{mnist_classifier_forward.3} parent=0 // pred_check
    _
  $region3: #{mnist_classifier_forward.3} parent=0 // pred_check_branch
    %12 = sbr.rel (0) target = $region5
  $region4: #{mnist_classifier_forward.3} parent=0 // pred_region
    _
  $region5: #{mnist_classifier_forward.3} parent=0 // pred_fallthru
    _
  // Predicated region
  $region6: #{mnist_classifier_forward.3} parent=0 // pred_check
    _
  $region7: #{mnist_classifier_forward.3} parent=0 // pred_check_branch
    %14 = sbr.rel (0) target = $region9
  $region8: #{mnist_classifier_forward.3} parent=0 // pred_region
    _
  $region9: #{mnist_classifier_forward.3} parent=0 // pred_fallthru
    _
  // Predicated region
  $region10: #{mnist_classifier_forward.3} parent=0 // pred_check
    _
  $region11: #{mnist_classifier_forward.3} parent=0 // pred_check_branch
    %16 = sbr.rel (0) target = $region13
  $region12: #{mnist_classifier_forward.3} parent=0 // pred_region
    _
  $region13: #{mnist_classifier_forward.3} parent=0 // pred_fallthru
    _
  // Predicated region
  $region14: #{mnist_classifier_forward.3} parent=0 // pred_check
    _
  $region15: #{mnist_classifier_forward.3} parent=0 // pred_check_branch
    %18 = sbr.rel (0) target = $region17
  $region16: #{mnist_classifier_forward.3} parent=0 // pred_region
    _
  $region17: #{mnist_classifier_forward.3} parent=0 // pred_fallthru
    _
  // Predicated region
  $region18: #{mnist_classifier_forward.3} parent=0 // pred_check
    _
  $region19: #{mnist_classifier_forward.3} parent=0 // pred_check_branch
    %20 = sbr.rel (0) target = $region21
  $region20: #{mnist_classifier_forward.3} parent=0 // pred_region
    _
  $region21: #{mnist_classifier_forward.3} parent=0 // pred_fallthru
    _
  // Predicated region
  $region22: #{mnist_classifier_forward.3} parent=0 // pred_check
    _
  $region23: #{mnist_classifier_forward.3} parent=0 // pred_check_branch
    %22 = sbr.rel (0) target = $region25
  $region24: #{mnist_classifier_forward.3} parent=0 // pred_region
    _
  $region25: #{mnist_classifier_forward.3} parent=0 // pred_fallthru
    _
  %v23 = vld [vmem:[%s4] sm:$0xff]
  %v24 = vld [vmem:[%s4 + $0x8] sm:$0xff]
  %v25 = vld [vmem:[%s4 + $0x10] sm:$0xff]
  %v26 = vld [vmem:[%s4 + $0x18] sm:$0x1]
  %v27 = vld [vmem:[%s0] sm:$0xff]
  %v28 = vld [vmem:[%s0 + $0x8] sm:$0xff]
  %v29 = vld [vmem:[%s0 + $0x10] sm:$0xff]
  %v30 = vld [vmem:[%s0 + $0x18] sm:$0xff]
  %v31 = vld [vmem:[%s0 + $0x20] sm:$0xff]
  %v32 = vld [vmem:[%s0 + $0x28] sm:$0xff]
  %v33 = vld [vmem:[%s0 + $0x30] sm:$0xff]
  %v34 = vld [vmem:[%s0 + $0x38] sm:$0xff]
  %v35 = vld [vmem:[%s0 + $0x40] sm:$0xff]
  %v36 = vld [vmem:[%s0 + $0x48] sm:$0xff]
  %v37 = vld [vmem:[%s0 + $0x50] sm:$0xff]
  %v38 = vld [vmem:[%s0 + $0x58] sm:$0xff]
  %v39 = vld [vmem:[%s0 + $0x60] sm:$0xff]
  %v40 = vld [vmem:[%s0 + $0x68] sm:$0xff]
  %v41 = vld [vmem:[%s0 + $0x70] sm:$0xff]
  %v42 = vld [vmem:[%s0 + $0x78] sm:$0xff]
  %v43 = vld [vmem:[%s0 + $0x80] sm:$0xff]
  %v44 = vld [vmem:[%s0 + $0x88] sm:$0xff]
  %v45 = vld [vmem:[%s0 + $0x90] sm:$0xff]
  %v46 = vld [vmem:[%s0 + $0x98] sm:$0xff]
  %v47 = vld [vmem:[%s0 + $0xa0] sm:$0xff]
  %v48 = vld [vmem:[%s0 + $0xa8] sm:$0xff]
  %v49 = vld [vmem:[%s0 + $0xb0] sm:$0xff]
  %v50 = vld [vmem:[%s0 + $0xb8] sm:$0xff]
  %v51 = vld [vmem:[%s0 + $0xc0] sm:$0xff]
  %v52 = vld [vmem:[%s0 + $0xc8] sm:$0xff]
  %v53 = vld [vmem:[%s0 + $0xd0] sm:$0xff]
  %v54 = vld [vmem:[%s0 + $0xd8] sm:$0xff]
  %v55 = vld [vmem:[%s0 + $0xe0] sm:$0xff]
  %v56 = vld [vmem:[%s0 + $0xe8] sm:$0xff]
  %v57 = vld [vmem:[%s0 + $0xf0] sm:$0xff]
  %v58 = vld [vmem:[%s0 + $0xf8] sm:$0xff]
  %v59 = vld [vmem:[%s0 + $0x100] sm:$0xff]
  %v60 = vld [vmem:[%s0 + $0x108] sm:$0xff]
  %v61 = vld [vmem:[%s0 + $0x110] sm:$0xff]
  %v62 = vld [vmem:[%s0 + $0x118] sm:$0xff]
  %vm63 = vcmask 203776
  %v65 = vsel %vm63, %v27, 0
  %v68 = vsel %vm63, %v28, 0
  %v71 = vsel %vm63, %v29, 0
  %v74 = vsel %vm63, %v30, 0
  %v77 = vsel %vm63, %v31, 0
  %v80 = vsel %vm63, %v32, 0
  %v83 = vsel %vm63, %v33, 0
  %v86 = vsel %vm63, %v34, 0
  %v89 = vsel %vm63, %v35, 0
  %v92 = vsel %vm63, %v36, 0
  %v95 = vsel %vm63, %v37, 0
  %v98 = vsel %vm63, %v38, 0
  %v101 = vsel %vm63, %v39, 0
  %v104 = vsel %vm63, %v40, 0
  %v107 = vsel %vm63, %v41, 0
  %v110 = vsel %vm63, %v42, 0
  %v113 = vsel %vm63, %v43, 0
  %v116 = vsel %vm63, %v44, 0
  %v119 = vsel %vm63, %v45, 0
  %v122 = vsel %vm63, %v46, 0
  %v125 = vsel %vm63, %v47, 0
  %v128 = vsel %vm63, %v48, 0
  %v131 = vsel %vm63, %v49, 0
  %v134 = vsel %vm63, %v50, 0
  %v137 = vsel %vm63, %v51, 0
  %v140 = vsel %vm63, %v52, 0
  %v143 = vsel %vm63, %v53, 0
  %v146 = vsel %vm63, %v54, 0
  %v149 = vsel %vm63, %v55, 0
  %v152 = vsel %vm63, %v56, 0
  %v155 = vsel %vm63, %v57, 0
  %v158 = vsel %vm63, %v58, 0
  %v161 = vsel %vm63, %v59, 0
  %v164 = vsel %vm63, %v60, 0
  %v167 = vsel %vm63, %v61, 0
  %v170 = vsel %vm63, %v62, 0
  %vm172 = vcmask 1040384
  %v174 = vsel %vm172, %v26, 0
  %176 = vmatpush.msra.mxu0 0.0
  %177 = vmatpush.msra.mxu0 0.0
  %178 = vmatpush.msra.mxu0 0.0
  %179 = vmatpush.msra.mxu0 0.0
  %180 = vmatpush.msra.mxu0 0.0
  %181 = vmatpush.msra.mxu0 0.0
  %182 = vmatpush.msra.mxu0 0.0
  %183 = vmatpush.msra.mxu0 0.0
  %184 = vmatpush.msra.mxu0 0.0
  %185 = vmatpush.msra.mxu0 0.0
  %186 = vmatpush.msra.mxu0 0.0
  %187 = vmatpush.msra.mxu0 0.0
  %188 = vmatpush.msra.mxu0 %v174
  %189 = vmatpush.msra.mxu0 %v25
  %190 = vmatpush.msra.mxu0 %v24
  %191 = vmatpush.msra.mxu0 %v23
  %192 = vmatmul.f32.gmra.mxu0 %v65
  %v193 = vpop.f32.mrf.mxu0
  %v194 = vadd.f32 0.0, %v193
  %195 = vmatmul.f32.gmra.mxu0 %v68
  %v196 = vpop.f32.mrf.mxu0
  %v197 = vadd.f32 0.0, %v196
  %198 = vmatmul.f32.gmra.mxu0 %v71
  %v199 = vpop.f32.mrf.mxu0
  %v200 = vadd.f32 0.0, %v199
  %201 = vmatmul.f32.gmra.mxu0 %v74
  %v202 = vpop.f32.mrf.mxu0
  %v203 = vadd.f32 0.0, %v202
  %204 = vmatmul.f32.gmra.mxu0 %v77
  %v205 = vpop.f32.mrf.mxu0
  %v206 = vadd.f32 0.0, %v205
  %207 = vmatmul.f32.gmra.mxu0 %v80
  %v208 = vpop.f32.mrf.mxu0
  %v209 = vadd.f32 0.0, %v208
  %210 = vmatmul.f32.gmra.mxu0 %v83
  %v211 = vpop.f32.mrf.mxu0
  %v212 = vadd.f32 0.0, %v211
  %213 = vmatmul.f32.gmra.mxu0 %v86
  %v214 = vpop.f32.mrf.mxu0
  %v215 = vadd.f32 0.0, %v214
  %216 = vmatmul.f32.gmra.mxu0 %v89
  %v217 = vpop.f32.mrf.mxu0
  %v218 = vadd.f32 0.0, %v217
  %219 = vmatmul.f32.gmra.mxu0 %v92
  %v220 = vpop.f32.mrf.mxu0
  %v221 = vadd.f32 0.0, %v220
  %222 = vmatmul.f32.gmra.mxu0 %v95
  %v223 = vpop.f32.mrf.mxu0
  %v224 = vadd.f32 0.0, %v223
  %225 = vmatmul.f32.gmra.mxu0 %v98
  %v226 = vpop.f32.mrf.mxu0
  %v227 = vadd.f32 0.0, %v226
  %228 = vmatmul.f32.gmra.mxu0 %v101
  %v229 = vpop.f32.mrf.mxu0
  %v230 = vadd.f32 0.0, %v229
  %231 = vmatmul.f32.gmra.mxu0 %v104
  %v232 = vpop.f32.mrf.mxu0
  %v233 = vadd.f32 0.0, %v232
  %234 = vmatmul.f32.gmra.mxu0 %v107
  %v235 = vpop.f32.mrf.mxu0
  %v236 = vadd.f32 0.0, %v235
  %237 = vmatmul.f32.gmra.mxu0 %v110
  %v238 = vpop.f32.mrf.mxu0
  %v239 = vadd.f32 0.0, %v238
  %240 = vmatmul.f32.gmra.mxu0 %v113
  %v241 = vpop.f32.mrf.mxu0
  %v242 = vadd.f32 0.0, %v241
  %243 = vmatmul.f32.gmra.mxu0 %v116
  %v244 = vpop.f32.mrf.mxu0
  %v245 = vadd.f32 0.0, %v244
  %246 = vmatmul.f32.gmra.mxu0 %v119
  %v247 = vpop.f32.mrf.mxu0
  %v248 = vadd.f32 0.0, %v247
  %249 = vmatmul.f32.gmra.mxu0 %v122
  %v250 = vpop.f32.mrf.mxu0
  %v251 = vadd.f32 0.0, %v250
  %252 = vmatmul.f32.gmra.mxu0 %v125
  %v253 = vpop.f32.mrf.mxu0
  %v254 = vadd.f32 0.0, %v253
  %255 = vmatmul.f32.gmra.mxu0 %v128
  %v256 = vpop.f32.mrf.mxu0
  %v257 = vadd.f32 0.0, %v256
  %258 = vmatmul.f32.gmra.mxu0 %v131
  %v259 = vpop.f32.mrf.mxu0
  %v260 = vadd.f32 0.0, %v259
  %261 = vmatmul.f32.gmra.mxu0 %v134
  %v262 = vpop.f32.mrf.mxu0
  %v263 = vadd.f32 0.0, %v262
  %264 = vmatmul.f32.gmra.mxu0 %v137
  %v265 = vpop.f32.mrf.mxu0
  %v266 = vadd.f32 0.0, %v265
  %267 = vmatmul.f32.gmra.mxu0 %v140
  %v268 = vpop.f32.mrf.mxu0
  %v269 = vadd.f32 0.0, %v268
  %270 = vmatmul.f32.gmra.mxu0 %v143
  %v271 = vpop.f32.mrf.mxu0
  %v272 = vadd.f32 0.0, %v271
  %273 = vmatmul.f32.gmra.mxu0 %v146
  %v274 = vpop.f32.mrf.mxu0
  %v275 = vadd.f32 0.0, %v274
  %276 = vmatmul.f32.gmra.mxu0 %v149
  %v277 = vpop.f32.mrf.mxu0
  %v278 = vadd.f32 0.0, %v277
  %279 = vmatmul.f32.gmra.mxu0 %v152
  %v280 = vpop.f32.mrf.mxu0
  %v281 = vadd.f32 0.0, %v280
  %282 = vmatmul.f32.gmra.mxu0 %v155
  %v283 = vpop.f32.mrf.mxu0
  %v284 = vadd.f32 0.0, %v283
  %285 = vmatmul.f32.gmra.mxu0 %v158
  %v286 = vpop.f32.mrf.mxu0
  %v287 = vadd.f32 0.0, %v286
  %288 = vmatmul.f32.gmra.mxu0 %v161
  %v289 = vpop.f32.mrf.mxu0
  %v290 = vadd.f32 0.0, %v289
  %291 = vmatmul.f32.gmra.mxu0 %v164
  %v292 = vpop.f32.mrf.mxu0
  %v293 = vadd.f32 0.0, %v292
  %294 = vmatmul.f32.gmra.mxu0 %v167
  %v295 = vpop.f32.mrf.mxu0
  %v296 = vadd.f32 0.0, %v295
  %297 = vmatmul.f32.gmra.mxu0 %v170
  %v298 = vpop.f32.mrf.mxu0
  %v299 = vadd.f32 0.0, %v298
  %300 = vdwg.mxu0
  %v301 = vld [vmem:[%s1] sm:$0xff]
  %v302 = vld [vmem:[%s1 + $0x8] sm:$0xff]
  %v303 = vld [vmem:[%s1 + $0x10] sm:$0xff]
  %v304 = vld [vmem:[%s1 + $0x18] sm:$0xff]
  %v305 = vld [vmem:[%s1 + $0x20] sm:$0xff]
  %v306 = vld [vmem:[%s1 + $0x28] sm:$0xff]
  %v307 = vld [vmem:[%s1 + $0x30] sm:$0xff]
  %v308 = vld [vmem:[%s1 + $0x38] sm:$0xff]
  %v309 = vld [vmem:[%s1 + $0x40] sm:$0xff]
  %v310 = vld [vmem:[%s1 + $0x48] sm:$0xff]
  %v311 = vld [vmem:[%s1 + $0x50] sm:$0xff]
  %v312 = vld [vmem:[%s1 + $0x58] sm:$0xff]
  %v313 = vld [vmem:[%s1 + $0x60] sm:$0xff]
  %v314 = vld [vmem:[%s1 + $0x68] sm:$0xff]
  %v315 = vld [vmem:[%s1 + $0x70] sm:$0xff]
  %v316 = vld [vmem:[%s1 + $0x78] sm:$0xff]
  %v317 = vld [vmem:[%s1 + $0x80] sm:$0xff]
  %v318 = vld [vmem:[%s1 + $0x88] sm:$0xff]
  %v319 = vld [vmem:[%s1 + $0x90] sm:$0xff]
  %v320 = vld [vmem:[%s1 + $0x98] sm:$0xff]
  %v321 = vld [vmem:[%s1 + $0xa0] sm:$0xff]
  %v322 = vld [vmem:[%s1 + $0xa8] sm:$0xff]
  %v323 = vld [vmem:[%s1 + $0xb0] sm:$0xff]
  %v324 = vld [vmem:[%s1 + $0xb8] sm:$0xff]
  %v325 = vld [vmem:[%s1 + $0xc0] sm:$0xff]
  %v326 = vld [vmem:[%s1 + $0xc8] sm:$0xff]
  %v327 = vld [vmem:[%s1 + $0xd0] sm:$0xff]
  %v328 = vld [vmem:[%s1 + $0xd8] sm:$0xff]
  %v329 = vld [vmem:[%s1 + $0xe0] sm:$0xff]
  %v330 = vld [vmem:[%s1 + $0xe8] sm:$0xff]
  %v331 = vld [vmem:[%s1 + $0xf0] sm:$0xff]
  %v332 = vld [vmem:[%s1 + $0xf8] sm:$0xff]
  %v333 = vld [vmem:[%s1 + $0x100] sm:$0xff]
  %v334 = vld [vmem:[%s1 + $0x108] sm:$0xff]
  %v335 = vld [vmem:[%s1 + $0x110] sm:$0xff]
  %v336 = vld [vmem:[%s1 + $0x118] sm:$0xff]
  %v338 = vsel %vm63, %v301, 0
  %v341 = vsel %vm63, %v302, 0
  %v344 = vsel %vm63, %v303, 0
  %v347 = vsel %vm63, %v304, 0
  %v350 = vsel %vm63, %v305, 0
  %v353 = vsel %vm63, %v306, 0
  %v356 = vsel %vm63, %v307, 0
  %v359 = vsel %vm63, %v308, 0
  %v362 = vsel %vm63, %v309, 0
  %v365 = vsel %vm63, %v310, 0
  %v368 = vsel %vm63, %v311, 0
  %v371 = vsel %vm63, %v312, 0
  %v374 = vsel %vm63, %v313, 0
  %v377 = vsel %vm63, %v314, 0
  %v380 = vsel %vm63, %v315, 0
  %v383 = vsel %vm63, %v316, 0
  %v386 = vsel %vm63, %v317, 0
  %v389 = vsel %vm63, %v318, 0
  %v392 = vsel %vm63, %v319, 0
  %v395 = vsel %vm63, %v320, 0
  %v398 = vsel %vm63, %v321, 0
  %v401 = vsel %vm63, %v322, 0
  %v404 = vsel %vm63, %v323, 0
  %v407 = vsel %vm63, %v324, 0
  %v410 = vsel %vm63, %v325, 0
  %v413 = vsel %vm63, %v326, 0
  %v416 = vsel %vm63, %v327, 0
  %v419 = vsel %vm63, %v328, 0
  %v422 = vsel %vm63, %v329, 0
  %v425 = vsel %vm63, %v330, 0
  %v428 = vsel %vm63, %v331, 0
  %v431 = vsel %vm63, %v332, 0
  %v434 = vsel %vm63, %v333, 0
  %v437 = vsel %vm63, %v334, 0
  %v440 = vsel %vm63, %v335, 0
  %v443 = vsel %vm63, %v336, 0
  %445 = vmatpush.msra.mxu0 0.0
  %446 = vmatpush.msra.mxu0 0.0
  %447 = vmatpush.msra.mxu0 0.0
  %448 = vmatpush.msra.mxu0 0.0
  %449 = vmatpush.msra.mxu0 0.0
  %450 = vmatpush.msra.mxu0 0.0
  %451 = vmatpush.msra.mxu0 0.0
  %452 = vmatpush.msra.mxu0 0.0
  %453 = vmatpush.msra.mxu0 0.0
  %454 = vmatpush.msra.mxu0 0.0
  %455 = vmatpush.msra.mxu0 0.0
  %456 = vmatpush.msra.mxu0 0.0
  %457 = vmatpush.msra.mxu0 %v174
  %458 = vmatpush.msra.mxu0 %v25
  %459 = vmatpush.msra.mxu0 %v24
  %460 = vmatpush.msra.mxu0 %v23
  %461 = vmatmul.f32.gmra.mxu0 %v338
  %v462 = vpop.f32.mrf.mxu0
  %v463 = vadd.f32 0.0, %v462
  %464 = vmatmul.f32.gmra.mxu0 %v341
  %v465 = vpop.f32.mrf.mxu0
  %v466 = vadd.f32 0.0, %v465
  %467 = vmatmul.f32.gmra.mxu0 %v344
  %v468 = vpop.f32.mrf.mxu0
  %v469 = vadd.f32 0.0, %v468
  %470 = vmatmul.f32.gmra.mxu0 %v347
  %v471 = vpop.f32.mrf.mxu0
  %v472 = vadd.f32 0.0, %v471
  %473 = vmatmul.f32.gmra.mxu0 %v350
  %v474 = vpop.f32.mrf.mxu0
  %v475 = vadd.f32 0.0, %v474
  %476 = vmatmul.f32.gmra.mxu0 %v353
  %v477 = vpop.f32.mrf.mxu0
  %v478 = vadd.f32 0.0, %v477
  %479 = vmatmul.f32.gmra.mxu0 %v356
  %v480 = vpop.f32.mrf.mxu0
  %v481 = vadd.f32 0.0, %v480
  %482 = vmatmul.f32.gmra.mxu0 %v359
  %v483 = vpop.f32.mrf.mxu0
  %v484 = vadd.f32 0.0, %v483
  %485 = vmatmul.f32.gmra.mxu0 %v362
  %v486 = vpop.f32.mrf.mxu0
  %v487 = vadd.f32 0.0, %v486
  %488 = vmatmul.f32.gmra.mxu0 %v365
  %v489 = vpop.f32.mrf.mxu0
  %v490 = vadd.f32 0.0, %v489
  %491 = vmatmul.f32.gmra.mxu0 %v368
  %v492 = vpop.f32.mrf.mxu0
  %v493 = vadd.f32 0.0, %v492
  %494 = vmatmul.f32.gmra.mxu0 %v371
  %v495 = vpop.f32.mrf.mxu0
  %v496 = vadd.f32 0.0, %v495
  %497 = vmatmul.f32.gmra.mxu0 %v374
  %v498 = vpop.f32.mrf.mxu0
  %v499 = vadd.f32 0.0, %v498
  %500 = vmatmul.f32.gmra.mxu0 %v377
  %v501 = vpop.f32.mrf.mxu0
  %v502 = vadd.f32 0.0, %v501
  %503 = vmatmul.f32.gmra.mxu0 %v380
  %v504 = vpop.f32.mrf.mxu0
  %v505 = vadd.f32 0.0, %v504
  %506 = vmatmul.f32.gmra.mxu0 %v383
  %v507 = vpop.f32.mrf.mxu0
  %v508 = vadd.f32 0.0, %v507
  %509 = vmatmul.f32.gmra.mxu0 %v386
  %v510 = vpop.f32.mrf.mxu0
  %v511 = vadd.f32 0.0, %v510
  %512 = vmatmul.f32.gmra.mxu0 %v389
  %v513 = vpop.f32.mrf.mxu0
  %v514 = vadd.f32 0.0, %v513
  %515 = vmatmul.f32.gmra.mxu0 %v392
  %v516 = vpop.f32.mrf.mxu0
  %v517 = vadd.f32 0.0, %v516
  %518 = vmatmul.f32.gmra.mxu0 %v395
  %v519 = vpop.f32.mrf.mxu0
  %v520 = vadd.f32 0.0, %v519
  %521 = vmatmul.f32.gmra.mxu0 %v398
  %v522 = vpop.f32.mrf.mxu0
  %v523 = vadd.f32 0.0, %v522
  %524 = vmatmul.f32.gmra.mxu0 %v401
  %v525 = vpop.f32.mrf.mxu0
  %v526 = vadd.f32 0.0, %v525
  %527 = vmatmul.f32.gmra.mxu0 %v404
  %v528 = vpop.f32.mrf.mxu0
  %v529 = vadd.f32 0.0, %v528
  %530 = vmatmul.f32.gmra.mxu0 %v407
  %v531 = vpop.f32.mrf.mxu0
  %v532 = vadd.f32 0.0, %v531
  %533 = vmatmul.f32.gmra.mxu0 %v410
  %v534 = vpop.f32.mrf.mxu0
  %v535 = vadd.f32 0.0, %v534
  %536 = vmatmul.f32.gmra.mxu0 %v413
  %v537 = vpop.f32.mrf.mxu0
  %v538 = vadd.f32 0.0, %v537
  %539 = vmatmul.f32.gmra.mxu0 %v416
  %v540 = vpop.f32.mrf.mxu0
  %v541 = vadd.f32 0.0, %v540
  %542 = vmatmul.f32.gmra.mxu0 %v419
  %v543 = vpop.f32.mrf.mxu0
  %v544 = vadd.f32 0.0, %v543
  %545 = vmatmul.f32.gmra.mxu0 %v422
  %v546 = vpop.f32.mrf.mxu0
  %v547 = vadd.f32 0.0, %v546
  %548 = vmatmul.f32.gmra.mxu0 %v425
  %v549 = vpop.f32.mrf.mxu0
  %v550 = vadd.f32 0.0, %v549
  %551 = vmatmul.f32.gmra.mxu0 %v428
  %v552 = vpop.f32.mrf.mxu0
  %v553 = vadd.f32 0.0, %v552
  %554 = vmatmul.f32.gmra.mxu0 %v431
  %v555 = vpop.f32.mrf.mxu0
  %v556 = vadd.f32 0.0, %v555
  %557 = vmatmul.f32.gmra.mxu0 %v434
  %v558 = vpop.f32.mrf.mxu0
  %v559 = vadd.f32 0.0, %v558
  %560 = vmatmul.f32.gmra.mxu0 %v437
  %v561 = vpop.f32.mrf.mxu0
  %v562 = vadd.f32 0.0, %v561
  %563 = vmatmul.f32.gmra.mxu0 %v440
  %v564 = vpop.f32.mrf.mxu0
  %v565 = vadd.f32 0.0, %v564
  %566 = vmatmul.f32.gmra.mxu0 %v443
  %v567 = vpop.f32.mrf.mxu0
  %v568 = vadd.f32 0.0, %v567
  %569 = vdwg.mxu0
  %v570 = vld [vmem:[%s2] sm:$0xff]
  %v571 = vld [vmem:[%s2 + $0x8] sm:$0xff]
  %v572 = vld [vmem:[%s2 + $0x10] sm:$0xff]
  %v573 = vld [vmem:[%s2 + $0x18] sm:$0xff]
  %v574 = vld [vmem:[%s2 + $0x20] sm:$0xff]
  %v575 = vld [vmem:[%s2 + $0x28] sm:$0xff]
  %v576 = vld [vmem:[%s2 + $0x30] sm:$0xff]
  %v577 = vld [vmem:[%s2 + $0x38] sm:$0xff]
  %v578 = vld [vmem:[%s2 + $0x40] sm:$0xff]
  %v579 = vld [vmem:[%s2 + $0x48] sm:$0xff]
  %v580 = vld [vmem:[%s2 + $0x50] sm:$0xff]
  %v581 = vld [vmem:[%s2 + $0x58] sm:$0xff]
  %v582 = vld [vmem:[%s2 + $0x60] sm:$0xff]
  %v583 = vld [vmem:[%s2 + $0x68] sm:$0xff]
  %v584 = vld [vmem:[%s2 + $0x70] sm:$0xff]
  %v585 = vld [vmem:[%s2 + $0x78] sm:$0xff]
  %v586 = vld [vmem:[%s2 + $0x80] sm:$0xff]
  %v587 = vld [vmem:[%s2 + $0x88] sm:$0xff]
  %v588 = vld [vmem:[%s2 + $0x90] sm:$0xff]
  %v589 = vld [vmem:[%s2 + $0x98] sm:$0xff]
  %v590 = vld [vmem:[%s2 + $0xa0] sm:$0xff]
  %v591 = vld [vmem:[%s2 + $0xa8] sm:$0xff]
  %v592 = vld [vmem:[%s2 + $0xb0] sm:$0xff]
  %v593 = vld [vmem:[%s2 + $0xb8] sm:$0xff]
  %v594 = vld [vmem:[%s2 + $0xc0] sm:$0xff]
  %v595 = vld [vmem:[%s2 + $0xc8] sm:$0xff]
  %v596 = vld [vmem:[%s2 + $0xd0] sm:$0xff]
  %v597 = vld [vmem:[%s2 + $0xd8] sm:$0xff]
  %v598 = vld [vmem:[%s2 + $0xe0] sm:$0xff]
  %v599 = vld [vmem:[%s2 + $0xe8] sm:$0xff]
  %v600 = vld [vmem:[%s2 + $0xf0] sm:$0xff]
  %v601 = vld [vmem:[%s2 + $0xf8] sm:$0xff]
  %v602 = vld [vmem:[%s2 + $0x100] sm:$0xff]
  %v603 = vld [vmem:[%s2 + $0x108] sm:$0xff]
  %v604 = vld [vmem:[%s2 + $0x110] sm:$0xff]
  %v605 = vld [vmem:[%s2 + $0x118] sm:$0xff]
  %v607 = vsel %vm63, %v570, 0
  %v610 = vsel %vm63, %v571, 0
  %v613 = vsel %vm63, %v572, 0
  %v616 = vsel %vm63, %v573, 0
  %v619 = vsel %vm63, %v574, 0
  %v622 = vsel %vm63, %v575, 0
  %v625 = vsel %vm63, %v576, 0
  %v628 = vsel %vm63, %v577, 0
  %v631 = vsel %vm63, %v578, 0
  %v634 = vsel %vm63, %v579, 0
  %v637 = vsel %vm63, %v580, 0
  %v640 = vsel %vm63, %v581, 0
  %v643 = vsel %vm63, %v582, 0
  %v646 = vsel %vm63, %v583, 0
  %v649 = vsel %vm63, %v584, 0
  %v652 = vsel %vm63, %v585, 0
  %v655 = vsel %vm63, %v586, 0
  %v658 = vsel %vm63, %v587, 0
  %v661 = vsel %vm63, %v588, 0
  %v664 = vsel %vm63, %v589, 0
  %v667 = vsel %vm63, %v590, 0
  %v670 = vsel %vm63, %v591, 0
  %v673 = vsel %vm63, %v592, 0
  %v676 = vsel %vm63, %v593, 0
  %v679 = vsel %vm63, %v594, 0
  %v682 = vsel %vm63, %v595, 0
  %v685 = vsel %vm63, %v596, 0
  %v688 = vsel %vm63, %v597, 0
  %v691 = vsel %vm63, %v598, 0
  %v694 = vsel %vm63, %v599, 0
  %v697 = vsel %vm63, %v600, 0
  %v700 = vsel %vm63, %v601, 0
  %v703 = vsel %vm63, %v602, 0
  %v706 = vsel %vm63, %v603, 0
  %v709 = vsel %vm63, %v604, 0
  %v712 = vsel %vm63, %v605, 0
  %714 = vmatpush.msra.mxu0 0.0
  %715 = vmatpush.msra.mxu0 0.0
  %716 = vmatpush.msra.mxu0 0.0
  %717 = vmatpush.msra.mxu0 0.0
  %718 = vmatpush.msra.mxu0 0.0
  %719 = vmatpush.msra.mxu0 0.0
  %720 = vmatpush.msra.mxu0 0.0
  %721 = vmatpush.msra.mxu0 0.0
  %722 = vmatpush.msra.mxu0 0.0
  %723 = vmatpush.msra.mxu0 0.0
  %724 = vmatpush.msra.mxu0 0.0
  %725 = vmatpush.msra.mxu0 0.0
  %726 = vmatpush.msra.mxu0 %v174
  %727 = vmatpush.msra.mxu0 %v25
  %728 = vmatpush.msra.mxu0 %v24
  %729 = vmatpush.msra.mxu0 %v23
  %730 = vmatmul.f32.gmra.mxu0 %v607
  %v731 = vpop.f32.mrf.mxu0
  %v732 = vadd.f32 0.0, %v731
  %733 = vmatmul.f32.gmra.mxu0 %v610
  %v734 = vpop.f32.mrf.mxu0
  %v735 = vadd.f32 0.0, %v734
  %736 = vmatmul.f32.gmra.mxu0 %v613
  %v737 = vpop.f32.mrf.mxu0
  %v738 = vadd.f32 0.0, %v737
  %739 = vmatmul.f32.gmra.mxu0 %v616
  %v740 = vpop.f32.mrf.mxu0
  %v741 = vadd.f32 0.0, %v740
  %742 = vmatmul.f32.gmra.mxu0 %v619
  %v743 = vpop.f32.mrf.mxu0
  %v744 = vadd.f32 0.0, %v743
  %745 = vmatmul.f32.gmra.mxu0 %v622
  %v746 = vpop.f32.mrf.mxu0
  %v747 = vadd.f32 0.0, %v746
  %748 = vmatmul.f32.gmra.mxu0 %v625
  %v749 = vpop.f32.mrf.mxu0
  %v750 = vadd.f32 0.0, %v749
  %751 = vmatmul.f32.gmra.mxu0 %v628
  %v752 = vpop.f32.mrf.mxu0
  %v753 = vadd.f32 0.0, %v752
  %754 = vmatmul.f32.gmra.mxu0 %v631
  %v755 = vpop.f32.mrf.mxu0
  %v756 = vadd.f32 0.0, %v755
  %757 = vmatmul.f32.gmra.mxu0 %v634
  %v758 = vpop.f32.mrf.mxu0
  %v759 = vadd.f32 0.0, %v758
  %760 = vmatmul.f32.gmra.mxu0 %v637
  %v761 = vpop.f32.mrf.mxu0
  %v762 = vadd.f32 0.0, %v761
  %763 = vmatmul.f32.gmra.mxu0 %v640
  %v764 = vpop.f32.mrf.mxu0
  %v765 = vadd.f32 0.0, %v764
  %766 = vmatmul.f32.gmra.mxu0 %v643
  %v767 = vpop.f32.mrf.mxu0
  %v768 = vadd.f32 0.0, %v767
  %769 = vmatmul.f32.gmra.mxu0 %v646
  %v770 = vpop.f32.mrf.mxu0
  %v771 = vadd.f32 0.0, %v770
  %772 = vmatmul.f32.gmra.mxu0 %v649
  %v773 = vpop.f32.mrf.mxu0
  %v774 = vadd.f32 0.0, %v773
  %775 = vmatmul.f32.gmra.mxu0 %v652
  %v776 = vpop.f32.mrf.mxu0
  %v777 = vadd.f32 0.0, %v776
  %778 = vmatmul.f32.gmra.mxu0 %v655
  %v779 = vpop.f32.mrf.mxu0
  %v780 = vadd.f32 0.0, %v779
  %781 = vmatmul.f32.gmra.mxu0 %v658
  %v782 = vpop.f32.mrf.mxu0
  %v783 = vadd.f32 0.0, %v782
  %784 = vmatmul.f32.gmra.mxu0 %v661
  %v785 = vpop.f32.mrf.mxu0
  %v786 = vadd.f32 0.0, %v785
  %787 = vmatmul.f32.gmra.mxu0 %v664
  %v788 = vpop.f32.mrf.mxu0
  %v789 = vadd.f32 0.0, %v788
  %790 = vmatmul.f32.gmra.mxu0 %v667
  %v791 = vpop.f32.mrf.mxu0
  %v792 = vadd.f32 0.0, %v791
  %793 = vmatmul.f32.gmra.mxu0 %v670
  %v794 = vpop.f32.mrf.mxu0
  %v795 = vadd.f32 0.0, %v794
  %796 = vmatmul.f32.gmra.mxu0 %v673
  %v797 = vpop.f32.mrf.mxu0
  %v798 = vadd.f32 0.0, %v797
  %799 = vmatmul.f32.gmra.mxu0 %v676
  %v800 = vpop.f32.mrf.mxu0
  %v801 = vadd.f32 0.0, %v800
  %802 = vmatmul.f32.gmra.mxu0 %v679
  %v803 = vpop.f32.mrf.mxu0
  %v804 = vadd.f32 0.0, %v803
  %805 = vmatmul.f32.gmra.mxu0 %v682
  %v806 = vpop.f32.mrf.mxu0
  %v807 = vadd.f32 0.0, %v806
  %808 = vmatmul.f32.gmra.mxu0 %v685
  %v809 = vpop.f32.mrf.mxu0
  %v810 = vadd.f32 0.0, %v809
  %811 = vmatmul.f32.gmra.mxu0 %v688
  %v812 = vpop.f32.mrf.mxu0
  %v813 = vadd.f32 0.0, %v812
  %814 = vmatmul.f32.gmra.mxu0 %v691
  %v815 = vpop.f32.mrf.mxu0
  %v816 = vadd.f32 0.0, %v815
  %817 = vmatmul.f32.gmra.mxu0 %v694
  %v818 = vpop.f32.mrf.mxu0
  %v819 = vadd.f32 0.0, %v818
  %820 = vmatmul.f32.gmra.mxu0 %v697
  %v821 = vpop.f32.mrf.mxu0
  %v822 = vadd.f32 0.0, %v821
  %823 = vmatmul.f32.gmra.mxu0 %v700
  %v824 = vpop.f32.mrf.mxu0
  %v825 = vadd.f32 0.0, %v824
  %826 = vmatmul.f32.gmra.mxu0 %v703
  %v827 = vpop.f32.mrf.mxu0
  %v828 = vadd.f32 0.0, %v827
  %829 = vmatmul.f32.gmra.mxu0 %v706
  %v830 = vpop.f32.mrf.mxu0
  %v831 = vadd.f32 0.0, %v830
  %832 = vmatmul.f32.gmra.mxu0 %v709
  %v833 = vpop.f32.mrf.mxu0
  %v834 = vadd.f32 0.0, %v833
  %835 = vmatmul.f32.gmra.mxu0 %v712
  %v836 = vpop.f32.mrf.mxu0
  %v837 = vadd.f32 0.0, %v836
  %838 = vdwg.mxu0
  %v839 = vld [vmem:[%s3] sm:$0xff]
  %v840 = vld [vmem:[%s3 + $0x8] sm:$0xff]
  %v841 = vld [vmem:[%s3 + $0x10] sm:$0xff]
  %v842 = vld [vmem:[%s3 + $0x18] sm:$0xff]
  %v843 = vld [vmem:[%s3 + $0x20] sm:$0xff]
  %v844 = vld [vmem:[%s3 + $0x28] sm:$0xff]
  %v845 = vld [vmem:[%s3 + $0x30] sm:$0xff]
  %v846 = vld [vmem:[%s3 + $0x38] sm:$0xff]
  %v847 = vld [vmem:[%s3 + $0x40] sm:$0xff]
  %v848 = vld [vmem:[%s3 + $0x48] sm:$0xff]
  %v849 = vld [vmem:[%s3 + $0x50] sm:$0xff]
  %v850 = vld [vmem:[%s3 + $0x58] sm:$0xff]
  %v851 = vld [vmem:[%s3 + $0x60] sm:$0xff]
  %v852 = vld [vmem:[%s3 + $0x68] sm:$0xff]
  %v853 = vld [vmem:[%s3 + $0x70] sm:$0xff]
  %v854 = vld [vmem:[%s3 + $0x78] sm:$0xff]
  %v855 = vld [vmem:[%s3 + $0x80] sm:$0xff]
  %v856 = vld [vmem:[%s3 + $0x88] sm:$0xff]
  %v857 = vld [vmem:[%s3 + $0x90] sm:$0xff]
  %v858 = vld [vmem:[%s3 + $0x98] sm:$0xff]
  %v859 = vld [vmem:[%s3 + $0xa0] sm:$0xff]
  %v860 = vld [vmem:[%s3 + $0xa8] sm:$0xff]
  %v861 = vld [vmem:[%s3 + $0xb0] sm:$0xff]
  %v862 = vld [vmem:[%s3 + $0xb8] sm:$0xff]
  %v863 = vld [vmem:[%s3 + $0xc0] sm:$0xff]
  %v864 = vld [vmem:[%s3 + $0xc8] sm:$0xff]
  %v865 = vld [vmem:[%s3 + $0xd0] sm:$0xff]
  %v866 = vld [vmem:[%s3 + $0xd8] sm:$0xff]
  %v867 = vld [vmem:[%s3 + $0xe0] sm:$0xff]
  %v868 = vld [vmem:[%s3 + $0xe8] sm:$0xff]
  %v869 = vld [vmem:[%s3 + $0xf0] sm:$0xff]
  %v870 = vld [vmem:[%s3 + $0xf8] sm:$0xff]
  %v871 = vld [vmem:[%s3 + $0x100] sm:$0xff]
  %v872 = vld [vmem:[%s3 + $0x108] sm:$0xff]
  %v873 = vld [vmem:[%s3 + $0x110] sm:$0xff]
  %v874 = vld [vmem:[%s3 + $0x118] sm:$0xff]
  %v876 = vsel %vm63, %v839, 0
  %v879 = vsel %vm63, %v840, 0
  %v882 = vsel %vm63, %v841, 0
  %v885 = vsel %vm63, %v842, 0
  %v888 = vsel %vm63, %v843, 0
  %v891 = vsel %vm63, %v844, 0
  %v894 = vsel %vm63, %v845, 0
  %v897 = vsel %vm63, %v846, 0
  %v900 = vsel %vm63, %v847, 0
  %v903 = vsel %vm63, %v848, 0
  %v906 = vsel %vm63, %v849, 0
  %v909 = vsel %vm63, %v850, 0
  %v912 = vsel %vm63, %v851, 0
  %v915 = vsel %vm63, %v852, 0
  %v918 = vsel %vm63, %v853, 0
  %v921 = vsel %vm63, %v854, 0
  %v924 = vsel %vm63, %v855, 0
  %v927 = vsel %vm63, %v856, 0
  %v930 = vsel %vm63, %v857, 0
  %v933 = vsel %vm63, %v858, 0
  %v936 = vsel %vm63, %v859, 0
  %v939 = vsel %vm63, %v860, 0
  %v942 = vsel %vm63, %v861, 0
  %v945 = vsel %vm63, %v862, 0
  %v948 = vsel %vm63, %v863, 0
  %v951 = vsel %vm63, %v864, 0
  %v954 = vsel %vm63, %v865, 0
  %v957 = vsel %vm63, %v866, 0
  %v960 = vsel %vm63, %v867, 0
  %v963 = vsel %vm63, %v868, 0
  %v966 = vsel %vm63, %v869, 0
  %v969 = vsel %vm63, %v870, 0
  %v972 = vsel %vm63, %v871, 0
  %v975 = vsel %vm63, %v872, 0
  %v978 = vsel %vm63, %v873, 0
  %v981 = vsel %vm63, %v874, 0
  %983 = vmatpush.msra.mxu0 0.0
  %984 = vmatpush.msra.mxu0 0.0
  %985 = vmatpush.msra.mxu0 0.0
  %986 = vmatpush.msra.mxu0 0.0
  %987 = vmatpush.msra.mxu0 0.0
  %988 = vmatpush.msra.mxu0 0.0
  %989 = vmatpush.msra.mxu0 0.0
  %990 = vmatpush.msra.mxu0 0.0
  %991 = vmatpush.msra.mxu0 0.0
  %992 = vmatpush.msra.mxu0 0.0
  %993 = vmatpush.msra.mxu0 0.0
  %994 = vmatpush.msra.mxu0 0.0
  %995 = vmatpush.msra.mxu0 %v174
  %996 = vmatpush.msra.mxu0 %v25
  %997 = vmatpush.msra.mxu0 %v24
  %998 = vmatpush.msra.mxu0 %v23
  %999 = vmatmul.f32.gmra.mxu0 %v876
  %v1000 = vpop.f32.mrf.mxu0
  %v1001 = vadd.f32 0.0, %v1000
  %1002 = vmatmul.f32.gmra.mxu0 %v879
  %v1003 = vpop.f32.mrf.mxu0
  %v1004 = vadd.f32 0.0, %v1003
  %1005 = vmatmul.f32.gmra.mxu0 %v882
  %v1006 = vpop.f32.mrf.mxu0
  %v1007 = vadd.f32 0.0, %v1006
  %1008 = vmatmul.f32.gmra.mxu0 %v885
  %v1009 = vpop.f32.mrf.mxu0
  %v1010 = vadd.f32 0.0, %v1009
  %1011 = vmatmul.f32.gmra.mxu0 %v888
  %v1012 = vpop.f32.mrf.mxu0
  %v1013 = vadd.f32 0.0, %v1012
  %1014 = vmatmul.f32.gmra.mxu0 %v891
  %v1015 = vpop.f32.mrf.mxu0
  %v1016 = vadd.f32 0.0, %v1015
  %1017 = vmatmul.f32.gmra.mxu0 %v894
  %v1018 = vpop.f32.mrf.mxu0
  %v1019 = vadd.f32 0.0, %v1018
  %1020 = vmatmul.f32.gmra.mxu0 %v897
  %v1021 = vpop.f32.mrf.mxu0
  %v1022 = vadd.f32 0.0, %v1021
  %1023 = vmatmul.f32.gmra.mxu0 %v900
  %v1024 = vpop.f32.mrf.mxu0
  %v1025 = vadd.f32 0.0, %v1024
  %1026 = vmatmul.f32.gmra.mxu0 %v903
  %v1027 = vpop.f32.mrf.mxu0
  %v1028 = vadd.f32 0.0, %v1027
  %1029 = vmatmul.f32.gmra.mxu0 %v906
  %v1030 = vpop.f32.mrf.mxu0
  %v1031 = vadd.f32 0.0, %v1030
  %1032 = vmatmul.f32.gmra.mxu0 %v909
  %v1033 = vpop.f32.mrf.mxu0
  %v1034 = vadd.f32 0.0, %v1033
  %1035 = vmatmul.f32.gmra.mxu0 %v912
  %v1036 = vpop.f32.mrf.mxu0
  %v1037 = vadd.f32 0.0, %v1036
  %1038 = vmatmul.f32.gmra.mxu0 %v915
  %v1039 = vpop.f32.mrf.mxu0
  %v1040 = vadd.f32 0.0, %v1039
  %1041 = vmatmul.f32.gmra.mxu0 %v918
  %v1042 = vpop.f32.mrf.mxu0
  %v1043 = vadd.f32 0.0, %v1042
  %1044 = vmatmul.f32.gmra.mxu0 %v921
  %v1045 = vpop.f32.mrf.mxu0
  %v1046 = vadd.f32 0.0, %v1045
  %1047 = vmatmul.f32.gmra.mxu0 %v924
  %v1048 = vpop.f32.mrf.mxu0
  %v1049 = vadd.f32 0.0, %v1048
  %1050 = vmatmul.f32.gmra.mxu0 %v927
  %v1051 = vpop.f32.mrf.mxu0
  %v1052 = vadd.f32 0.0, %v1051
  %1053 = vmatmul.f32.gmra.mxu0 %v930
  %v1054 = vpop.f32.mrf.mxu0
  %v1055 = vadd.f32 0.0, %v1054
  %1056 = vmatmul.f32.gmra.mxu0 %v933
  %v1057 = vpop.f32.mrf.mxu0
  %v1058 = vadd.f32 0.0, %v1057
  %1059 = vmatmul.f32.gmra.mxu0 %v936
  %v1060 = vpop.f32.mrf.mxu0
  %v1061 = vadd.f32 0.0, %v1060
  %1062 = vmatmul.f32.gmra.mxu0 %v939
  %v1063 = vpop.f32.mrf.mxu0
  %v1064 = vadd.f32 0.0, %v1063
  %1065 = vmatmul.f32.gmra.mxu0 %v942
  %v1066 = vpop.f32.mrf.mxu0
  %v1067 = vadd.f32 0.0, %v1066
  %1068 = vmatmul.f32.gmra.mxu0 %v945
  %v1069 = vpop.f32.mrf.mxu0
  %v1070 = vadd.f32 0.0, %v1069
  %1071 = vmatmul.f32.gmra.mxu0 %v948
  %v1072 = vpop.f32.mrf.mxu0
  %v1073 = vadd.f32 0.0, %v1072
  %1074 = vmatmul.f32.gmra.mxu0 %v951
  %v1075 = vpop.f32.mrf.mxu0
  %v1076 = vadd.f32 0.0, %v1075
  %1077 = vmatmul.f32.gmra.mxu0 %v954
  %v1078 = vpop.f32.mrf.mxu0
  %v1079 = vadd.f32 0.0, %v1078
  %1080 = vmatmul.f32.gmra.mxu0 %v957
  %v1081 = vpop.f32.mrf.mxu0
  %v1082 = vadd.f32 0.0, %v1081
  %1083 = vmatmul.f32.gmra.mxu0 %v960
  %v1084 = vpop.f32.mrf.mxu0
  %v1085 = vadd.f32 0.0, %v1084
  %1086 = vmatmul.f32.gmra.mxu0 %v963
  %v1087 = vpop.f32.mrf.mxu0
  %v1088 = vadd.f32 0.0, %v1087
  %1089 = vmatmul.f32.gmra.mxu0 %v966
  %v1090 = vpop.f32.mrf.mxu0
  %v1091 = vadd.f32 0.0, %v1090
  %1092 = vmatmul.f32.gmra.mxu0 %v969
  %v1093 = vpop.f32.mrf.mxu0
  %v1094 = vadd.f32 0.0, %v1093
  %1095 = vmatmul.f32.gmra.mxu0 %v972
  %v1096 = vpop.f32.mrf.mxu0
  %v1097 = vadd.f32 0.0, %v1096
  %1098 = vmatmul.f32.gmra.mxu0 %v975
  %v1099 = vpop.f32.mrf.mxu0
  %v1100 = vadd.f32 0.0, %v1099
  %1101 = vmatmul.f32.gmra.mxu0 %v978
  %v1102 = vpop.f32.mrf.mxu0
  %v1103 = vadd.f32 0.0, %v1102
  %1104 = vmatmul.f32.gmra.mxu0 %v981
  %v1105 = vpop.f32.mrf.mxu0
  %v1106 = vadd.f32 0.0, %v1105
  %1107 = vdwg.mxu0
  %v1108 = vmax.f32 %v194, %v463
  %v1109 = vmax.f32 %v197, %v466
  %v1110 = vmax.f32 %v200, %v469
  %v1111 = vmax.f32 %v203, %v472
  %v1112 = vmax.f32 %v206, %v475
  %v1113 = vmax.f32 %v209, %v478
  %v1114 = vmax.f32 %v212, %v481
  %v1115 = vmax.f32 %v215, %v484
  %v1116 = vmax.f32 %v218, %v487
  %v1117 = vmax.f32 %v221, %v490
  %v1118 = vmax.f32 %v224, %v493
  %v1119 = vmax.f32 %v227, %v496
  %v1120 = vmax.f32 %v230, %v499
  %v1121 = vmax.f32 %v233, %v502
  %v1122 = vmax.f32 %v236, %v505
  %v1123 = vmax.f32 %v239, %v508
  %v1124 = vmax.f32 %v242, %v511
  %v1125 = vmax.f32 %v245, %v514
  %v1126 = vmax.f32 %v248, %v517
  %v1127 = vmax.f32 %v251, %v520
  %v1128 = vmax.f32 %v254, %v523
  %v1129 = vmax.f32 %v257, %v526
  %v1130 = vmax.f32 %v260, %v529
  %v1131 = vmax.f32 %v263, %v532
  %v1132 = vmax.f32 %v266, %v535
  %v1133 = vmax.f32 %v269, %v538
  %v1134 = vmax.f32 %v272, %v541
  %v1135 = vmax.f32 %v275, %v544
  %v1136 = vmax.f32 %v278, %v547
  %v1137 = vmax.f32 %v281, %v550
  %v1138 = vmax.f32 %v284, %v553
  %v1139 = vmax.f32 %v287, %v556
  %v1140 = vmax.f32 %v290, %v559
  %v1141 = vmax.f32 %v293, %v562
  %v1142 = vmax.f32 %v296, %v565
  %v1143 = vmax.f32 %v299, %v568
  %v1144 = vmax.f32 %v732, %v1001
  %v1145 = vmax.f32 %v735, %v1004
  %v1146 = vmax.f32 %v738, %v1007
  %v1147 = vmax.f32 %v741, %v1010
  %v1148 = vmax.f32 %v744, %v1013
  %v1149 = vmax.f32 %v747, %v1016
  %v1150 = vmax.f32 %v750, %v1019
  %v1151 = vmax.f32 %v753, %v1022
  %v1152 = vmax.f32 %v756, %v1025
  %v1153 = vmax.f32 %v759, %v1028
  %v1154 = vmax.f32 %v762, %v1031
  %v1155 = vmax.f32 %v765, %v1034
  %v1156 = vmax.f32 %v768, %v1037
  %v1157 = vmax.f32 %v771, %v1040
  %v1158 = vmax.f32 %v774, %v1043
  %v1159 = vmax.f32 %v777, %v1046
  %v1160 = vmax.f32 %v780, %v1049
  %v1161 = vmax.f32 %v783, %v1052
  %v1162 = vmax.f32 %v786, %v1055
  %v1163 = vmax.f32 %v789, %v1058
  %v1164 = vmax.f32 %v792, %v1061
  %v1165 = vmax.f32 %v795, %v1064
  %v1166 = vmax.f32 %v798, %v1067
  %v1167 = vmax.f32 %v801, %v1070
  %v1168 = vmax.f32 %v804, %v1073
  %v1169 = vmax.f32 %v807, %v1076
  %v1170 = vmax.f32 %v810, %v1079
  %v1171 = vmax.f32 %v813, %v1082
  %v1172 = vmax.f32 %v816, %v1085
  %v1173 = vmax.f32 %v819, %v1088
  %v1174 = vmax.f32 %v822, %v1091
  %v1175 = vmax.f32 %v825, %v1094
  %v1176 = vmax.f32 %v828, %v1097
  %v1177 = vmax.f32 %v831, %v1100
  %v1178 = vmax.f32 %v834, %v1103
  %v1179 = vmax.f32 %v837, %v1106
  %v1180 = vmax.f32 %v1108, %v1144
  %v1181 = vmax.f32 %v1109, %v1145
  %v1182 = vmax.f32 %v1110, %v1146
  %v1183 = vmax.f32 %v1111, %v1147
  %v1184 = vmax.f32 %v1112, %v1148
  %v1185 = vmax.f32 %v1113, %v1149
  %v1186 = vmax.f32 %v1114, %v1150
  %v1187 = vmax.f32 %v1115, %v1151
  %v1188 = vmax.f32 %v1116, %v1152
  %v1189 = vmax.f32 %v1117, %v1153
  %v1190 = vmax.f32 %v1118, %v1154
  %v1191 = vmax.f32 %v1119, %v1155
  %v1192 = vmax.f32 %v1120, %v1156
  %v1193 = vmax.f32 %v1121, %v1157
  %v1194 = vmax.f32 %v1122, %v1158
  %v1195 = vmax.f32 %v1123, %v1159
  %v1196 = vmax.f32 %v1124, %v1160
  %v1197 = vmax.f32 %v1125, %v1161
  %v1198 = vmax.f32 %v1126, %v1162
  %v1199 = vmax.f32 %v1127, %v1163
  %v1200 = vmax.f32 %v1128, %v1164
  %v1201 = vmax.f32 %v1129, %v1165
  %v1202 = vmax.f32 %v1130, %v1166
  %v1203 = vmax.f32 %v1131, %v1167
  %v1204 = vmax.f32 %v1132, %v1168
  %v1205 = vmax.f32 %v1133, %v1169
  %v1206 = vmax.f32 %v1134, %v1170
  %v1207 = vmax.f32 %v1135, %v1171
  %v1208 = vmax.f32 %v1136, %v1172
  %v1209 = vmax.f32 %v1137, %v1173
  %v1210 = vmax.f32 %v1138, %v1174
  %v1211 = vmax.f32 %v1139, %v1175
  %v1212 = vmax.f32 %v1140, %v1176
  %v1213 = vmax.f32 %v1141, %v1177
  %v1214 = vmax.f32 %v1142, %v1178
  %v1215 = vmax.f32 %v1143, %v1179
  %v1216 = vld [vmem:[%s5] sm:$0x1]
  %v1218 = vperm.slane %v1216, 0
  %v1220 = vadd.f32 %v1180, %v1218
  %v1221 = vadd.f32 %v1181, %v1218
  %v1222 = vadd.f32 %v1182, %v1218
  %v1223 = vadd.f32 %v1183, %v1218
  %v1224 = vadd.f32 %v1184, %v1218
  %v1225 = vadd.f32 %v1185, %v1218
  %v1226 = vadd.f32 %v1186, %v1218
  %v1227 = vadd.f32 %v1187, %v1218
  %v1228 = vadd.f32 %v1188, %v1218
  %v1229 = vadd.f32 %v1189, %v1218
  %v1230 = vadd.f32 %v1190, %v1218
  %v1231 = vadd.f32 %v1191, %v1218
  %v1232 = vadd.f32 %v1192, %v1218
  %v1233 = vadd.f32 %v1193, %v1218
  %v1234 = vadd.f32 %v1194, %v1218
  %v1235 = vadd.f32 %v1195, %v1218
  %v1236 = vadd.f32 %v1196, %v1218
  %v1237 = vadd.f32 %v1197, %v1218
  %v1238 = vadd.f32 %v1198, %v1218
  %v1239 = vadd.f32 %v1199, %v1218
  %v1240 = vadd.f32 %v1200, %v1218
  %v1241 = vadd.f32 %v1201, %v1218
  %v1242 = vadd.f32 %v1202, %v1218
  %v1243 = vadd.f32 %v1203, %v1218
  %v1244 = vadd.f32 %v1204, %v1218
  %v1245 = vadd.f32 %v1205, %v1218
  %v1246 = vadd.f32 %v1206, %v1218
  %v1247 = vadd.f32 %v1207, %v1218
  %v1248 = vadd.f32 %v1208, %v1218
  %v1249 = vadd.f32 %v1209, %v1218
  %v1250 = vadd.f32 %v1210, %v1218
  %v1251 = vadd.f32 %v1211, %v1218
  %v1252 = vadd.f32 %v1212, %v1218
  %v1253 = vadd.f32 %v1213, %v1218
  %v1254 = vadd.f32 %v1214, %v1218
  %v1255 = vadd.f32 %v1215, %v1218
  %v1256 = vmax.f32 %v1220, 0.0
  %v1257 = vmax.f32 %v1221, 0.0
  %v1258 = vmax.f32 %v1222, 0.0
  %v1259 = vmax.f32 %v1223, 0.0
  %v1260 = vmax.f32 %v1224, 0.0
  %v1261 = vmax.f32 %v1225, 0.0
  %v1262 = vmax.f32 %v1226, 0.0
  %v1263 = vmax.f32 %v1227, 0.0
  %v1264 = vmax.f32 %v1228, 0.0
  %v1265 = vmax.f32 %v1229, 0.0
  %v1266 = vmax.f32 %v1230, 0.0
  %v1267 = vmax.f32 %v1231, 0.0
  %v1268 = vmax.f32 %v1232, 0.0
  %v1269 = vmax.f32 %v1233, 0.0
  %v1270 = vmax.f32 %v1234, 0.0
  %v1271 = vmax.f32 %v1235, 0.0
  %v1272 = vmax.f32 %v1236, 0.0
  %v1273 = vmax.f32 %v1237, 0.0
  %v1274 = vmax.f32 %v1238, 0.0
  %v1275 = vmax.f32 %v1239, 0.0
  %v1276 = vmax.f32 %v1240, 0.0
  %v1277 = vmax.f32 %v1241, 0.0
  %v1278 = vmax.f32 %v1242, 0.0
  %v1279 = vmax.f32 %v1243, 0.0
  %v1280 = vmax.f32 %v1244, 0.0
  %v1281 = vmax.f32 %v1245, 0.0
  %v1282 = vmax.f32 %v1246, 0.0
  %v1283 = vmax.f32 %v1247, 0.0
  %v1284 = vmax.f32 %v1248, 0.0
  %v1285 = vmax.f32 %v1249, 0.0
  %v1286 = vmax.f32 %v1250, 0.0
  %v1287 = vmax.f32 %v1251, 0.0
  %v1288 = vmax.f32 %v1252, 0.0
  %v1289 = vmax.f32 %v1253, 0.0
  %v1290 = vmax.f32 %v1254, 0.0
  %v1291 = vmax.f32 %v1255, 0.0
  %1292 = vst [vmem:[%s6] sm:$0xff] %v1256
  %1293 = vst [vmem:[%s6 + $0x8] sm:$0xff] %v1257
  %1294 = vst [vmem:[%s6 + $0x10] sm:$0xff] %v1258
  %1295 = vst [vmem:[%s6 + $0x18] sm:$0xff] %v1259
  %1296 = vst [vmem:[%s6 + $0x20] sm:$0xff] %v1260
  %1297 = vst [vmem:[%s6 + $0x28] sm:$0xff] %v1261
  %1298 = vst [vmem:[%s6 + $0x30] sm:$0xff] %v1262
  %1299 = vst [vmem:[%s6 + $0x38] sm:$0xff] %v1263
  %1300 = vst [vmem:[%s6 + $0x40] sm:$0xff] %v1264
  %1301 = vst [vmem:[%s6 + $0x48] sm:$0xff] %v1265
  %1302 = vst [vmem:[%s6 + $0x50] sm:$0xff] %v1266
  %1303 = vst [vmem:[%s6 + $0x58] sm:$0xff] %v1267
  %1304 = vst [vmem:[%s6 + $0x60] sm:$0xff] %v1268
  %1305 = vst [vmem:[%s6 + $0x68] sm:$0xff] %v1269
  %1306 = vst [vmem:[%s6 + $0x70] sm:$0xff] %v1270
  %1307 = vst [vmem:[%s6 + $0x78] sm:$0xff] %v1271
  %1308 = vst [vmem:[%s6 + $0x80] sm:$0xff] %v1272
  %1309 = vst [vmem:[%s6 + $0x88] sm:$0xff] %v1273
  %1310 = vst [vmem:[%s6 + $0x90] sm:$0xff] %v1274
  %1311 = vst [vmem:[%s6 + $0x98] sm:$0xff] %v1275
  %1312 = vst [vmem:[%s6 + $0xa0] sm:$0xff] %v1276
  %1313 = vst [vmem:[%s6 + $0xa8] sm:$0xff] %v1277
  %1314 = vst [vmem:[%s6 + $0xb0] sm:$0xff] %v1278
  %1315 = vst [vmem:[%s6 + $0xb8] sm:$0xff] %v1279
  %1316 = vst [vmem:[%s6 + $0xc0] sm:$0xff] %v1280
  %1317 = vst [vmem:[%s6 + $0xc8] sm:$0xff] %v1281
  %1318 = vst [vmem:[%s6 + $0xd0] sm:$0xff] %v1282
  %1319 = vst [vmem:[%s6 + $0xd8] sm:$0xff] %v1283
  %1320 = vst [vmem:[%s6 + $0xe0] sm:$0xff] %v1284
  %1321 = vst [vmem:[%s6 + $0xe8] sm:$0xff] %v1285
  %1322 = vst [vmem:[%s6 + $0xf0] sm:$0xff] %v1286
  %1323 = vst [vmem:[%s6 + $0xf8] sm:$0xff] %v1287
  %1324 = vst [vmem:[%s6 + $0x100] sm:$0xff] %v1288
  %1325 = vst [vmem:[%s6 + $0x108] sm:$0xff] %v1289
  %1326 = vst [vmem:[%s6 + $0x110] sm:$0xff] %v1290
  %1327 = vst [vmem:[%s6 + $0x118] sm:$0xff] %v1291
  // Predicated region
  $region26: #{mnist_classifier_forward.3} parent=0 // pred_check
    _
  $region27: #{mnist_classifier_forward.3} parent=0 // pred_check_branch
    %1329 = sbr.rel (0) target = $region29
  $region28: #{mnist_classifier_forward.3} parent=0 // pred_region
    _
  $region29: #{mnist_classifier_forward.3} parent=0 // pred_fallthru
    _
  // Predicated region
  $region30: #{mnist_classifier_forward.3} parent=0 // pred_check
    _
  $region31: #{mnist_classifier_forward.3} parent=0 // pred_check_branch
    %1331 = sbr.rel (0) target = $region33
  $region32: #{mnist_classifier_forward.3} parent=0 // pred_region
    _
  $region33: #{mnist_classifier_forward.3} parent=0 // pred_fallthru
    _

// kernel: mnist_classifier_forward.4
$region0: #{mnist_classifier_forward.4}
  #allocation0 [shape = 'u32[]', space=smem, size = 0x4, offset = 0x4, fixed_abs, tag = 'smem constant byte address 0x4 - core index']
  #allocation1 [shape = 'u32[72,128]{1,0:T(1,128)}', space=vmem, size = 0x9000, scoped, tag = 'internal scratch']
  %s0 = inlined_call_operand.vmem [shape: f32[32,250], index: 0, kind: input, shape index: {}]
  %s1 = inlined_call_operand.vmem [shape: f32[32,250], index: 1, kind: input, shape index: {}]
  %s2 = inlined_call_operand.vmem [shape: f32[32,250], index: 2, kind: input, shape index: {}]
  %s3 = inlined_call_operand.vmem [shape: f32[32,250], index: 3, kind: input, shape index: {}]
  %s4 = inlined_call_operand.vmem [shape: f32[250,128], index: 4, kind: input, shape index: {}]
  %s5 = inlined_call_operand.vmem [shape: f32[1,128], index: 5, kind: input, shape index: {}]
  %s6 = inlined_call_operand.vmem [shape: f32[32,128], index: 6, kind: output, shape index: {}]
  %s7 = sld [smem:[#allocation0]]
  $region34: #{mnist_classifier_forward.4} parent=0
    _
  %s9 = ssub.s32 1, %s7
  %s10 = scalar_select 0, %s9, %s7
  // Predicated region
  $region2: #{mnist_classifier_forward.4} parent=0 // pred_check
    _
  $region3: #{mnist_classifier_forward.4} parent=0 // pred_check_branch
    %12 = sbr.rel (0) target = $region5
  $region4: #{mnist_classifier_forward.4} parent=0 // pred_region
    _
  $region5: #{mnist_classifier_forward.4} parent=0 // pred_fallthru
    _
  // Predicated region
  $region6: #{mnist_classifier_forward.4} parent=0 // pred_check
    _
  $region7: #{mnist_classifier_forward.4} parent=0 // pred_check_branch
    %14 = sbr.rel (0) target = $region9
  $region8: #{mnist_classifier_forward.4} parent=0 // pred_region
    _
  $region9: #{mnist_classifier_forward.4} parent=0 // pred_fallthru
    _
  // Predicated region
  $region10: #{mnist_classifier_forward.4} parent=0 // pred_check
    _
  $region11: #{mnist_classifier_forward.4} parent=0 // pred_check_branch
    %16 = sbr.rel (0) target = $region13
  $region12: #{mnist_classifier_forward.4} parent=0 // pred_region
    _
  $region13: #{mnist_classifier_forward.4} parent=0 // pred_fallthru
    _
  // Predicated region
  $region14: #{mnist_classifier_forward.4} parent=0 // pred_check
    _
  $region15: #{mnist_classifier_forward.4} parent=0 // pred_check_branch
    %18 = sbr.rel (0) target = $region17
  $region16: #{mnist_classifier_forward.4} parent=0 // pred_region
    _
  $region17: #{mnist_classifier_forward.4} parent=0 // pred_fallthru
    _
  // Predicated region
  $region18: #{mnist_classifier_forward.4} parent=0 // pred_check
    _
  $region19: #{mnist_classifier_forward.4} parent=0 // pred_check_branch
    %20 = sbr.rel (0) target = $region21
  $region20: #{mnist_classifier_forward.4} parent=0 // pred_region
    _
  $region21: #{mnist_classifier_forward.4} parent=0 // pred_fallthru
    _
  // Predicated region
  $region22: #{mnist_classifier_forward.4} parent=0 // pred_check
    _
  $region23: #{mnist_classifier_forward.4} parent=0 // pred_check_branch
    %22 = sbr.rel (0) target = $region25
  $region24: #{mnist_classifier_forward.4} parent=0 // pred_region
    _
  $region25: #{mnist_classifier_forward.4} parent=0 // pred_fallthru
    _
  %v23 = vld [vmem:[%s4] sm:$0xff]
  %v24 = vld [vmem:[%s4 + $0x8] sm:$0xff]
  %v25 = vld [vmem:[%s4 + $0x10] sm:$0xff]
  %v26 = vld [vmem:[%s4 + $0x18] sm:$0xff]
  %v27 = vld [vmem:[%s4 + $0x20] sm:$0xff]
  %v28 = vld [vmem:[%s4 + $0x28] sm:$0xff]
  %v29 = vld [vmem:[%s4 + $0x30] sm:$0xff]
  %v30 = vld [vmem:[%s4 + $0x38] sm:$0xff]
  %v31 = vld [vmem:[%s4 + $0x40] sm:$0xff]
  %v32 = vld [vmem:[%s4 + $0x48] sm:$0xff]
  %v33 = vld [vmem:[%s4 + $0x50] sm:$0xff]
  %v34 = vld [vmem:[%s4 + $0x58] sm:$0xff]
  %v35 = vld [vmem:[%s4 + $0x60] sm:$0xff]
  %v36 = vld [vmem:[%s4 + $0x68] sm:$0xff]
  %v37 = vld [vmem:[%s4 + $0x70] sm:$0xff]
  %v38 = vld [vmem:[%s4 + $0x78] sm:$0xff]
  %v39 = vld [vmem:[%s4 + $0x80] sm:$0xff]
  %v40 = vld [vmem:[%s4 + $0x88] sm:$0xff]
  %v41 = vld [vmem:[%s4 + $0x90] sm:$0xff]
  %v42 = vld [vmem:[%s4 + $0x98] sm:$0xff]
  %v43 = vld [vmem:[%s4 + $0xa0] sm:$0xff]
  %v44 = vld [vmem:[%s4 + $0xa8] sm:$0xff]
  %v45 = vld [vmem:[%s4 + $0xb0] sm:$0xff]
  %v46 = vld [vmem:[%s4 + $0xb8] sm:$0xff]
  %v47 = vld [vmem:[%s4 + $0xc0] sm:$0xff]
  %v48 = vld [vmem:[%s4 + $0xc8] sm:$0xff]
  %v49 = vld [vmem:[%s4 + $0xd0] sm:$0xff]
  %v50 = vld [vmem:[%s4 + $0xd8] sm:$0xff]
  %v51 = vld [vmem:[%s4 + $0xe0] sm:$0xff]
  %v52 = vld [vmem:[%s4 + $0xe8] sm:$0xff]
  %v53 = vld [vmem:[%s4 + $0xf0] sm:$0xff]
  %v54 = vld [vmem:[%s4 + $0xf8] sm:$0x3]
  %v55 = vld [vmem:[%s0] sm:$0xff]
  %v56 = vld [vmem:[%s0 + $0x8] sm:$0xff]
  %v57 = vld [vmem:[%s0 + $0x10] sm:$0xff]
  %v58 = vld [vmem:[%s0 + $0x18] sm:$0xff]
  %v59 = vld [vmem:[%s0 + $0x20] sm:$0xff]
  %v60 = vld [vmem:[%s0 + $0x28] sm:$0xff]
  %v61 = vld [vmem:[%s0 + $0x30] sm:$0xff]
  %v62 = vld [vmem:[%s0 + $0x38] sm:$0xff]
  %vm63 = vcmask 998400
  %v65 = vsel %vm63, %v56, 0
  %v68 = vsel %vm63, %v58, 0
  %v71 = vsel %vm63, %v60, 0
  %v74 = vsel %vm63, %v62, 0
  %vm76 = vcmask 1041408
  %v78 = vsel %vm76, %v54, 0
  %80 = vmatpush.msra.mxu0 %v38
  %81 = vmatpush.msra.mxu0 %v37
  %82 = vmatpush.msra.mxu0 %v36
  %83 = vmatpush.msra.mxu0 %v35
  %84 = vmatpush.msra.mxu0 %v34
  %85 = vmatpush.msra.mxu0 %v33
  %86 = vmatpush.msra.mxu0 %v32
  %87 = vmatpush.msra.mxu0 %v31
  %88 = vmatpush.msra.mxu0 %v30
  %89 = vmatpush.msra.mxu0 %v29
  %90 = vmatpush.msra.mxu0 %v28
  %91 = vmatpush.msra.mxu0 %v27
  %92 = vmatpush.msra.mxu0 %v26
  %93 = vmatpush.msra.mxu0 %v25
  %94 = vmatpush.msra.mxu0 %v24
  %95 = vmatpush.msra.mxu0 %v23
  %96 = vmatmul.f32.gmra.mxu0 %v55
  %v97 = vpop.f32.mrf.mxu0
  %v98 = vadd.f32 0.0, %v97
  %99 = vmatmul.f32.gmra.mxu0 %v57
  %v100 = vpop.f32.mrf.mxu0
  %v101 = vadd.f32 0.0, %v100
  %102 = vmatmul.f32.gmra.mxu0 %v59
  %v103 = vpop.f32.mrf.mxu0
  %v104 = vadd.f32 0.0, %v103
  %105 = vmatmul.f32.gmra.mxu0 %v61
  %v106 = vpop.f32.mrf.mxu0
  %v107 = vadd.f32 0.0, %v106
  %108 = vdwg.mxu0
  %109 = vmatpush.msra.mxu0 %v78
  %110 = vmatpush.msra.mxu0 %v53
  %111 = vmatpush.msra.mxu0 %v52
  %112 = vmatpush.msra.mxu0 %v51
  %113 = vmatpush.msra.mxu0 %v50
  %114 = vmatpush.msra.mxu0 %v49
  %115 = vmatpush.msra.mxu0 %v48
  %116 = vmatpush.msra.mxu0 %v47
  %117 = vmatpush.msra.mxu0 %v46
  %118 = vmatpush.msra.mxu0 %v45
  %119 = vmatpush.msra.mxu0 %v44
  %120 = vmatpush.msra.mxu0 %v43
  %121 = vmatpush.msra.mxu0 %v42
  %122 = vmatpush.msra.mxu0 %v41
  %123 = vmatpush.msra.mxu0 %v40
  %124 = vmatpush.msra.mxu0 %v39
  %125 = vmatmul.f32.gmra.mxu0 %v65
  %v126 = vpop.f32.mrf.mxu0
  %v127 = vadd.f32 %v98, %v126
  %128 = vmatmul.f32.gmra.mxu0 %v68
  %v129 = vpop.f32.mrf.mxu0
  %v130 = vadd.f32 %v101, %v129
  %131 = vmatmul.f32.gmra.mxu0 %v71
  %v132 = vpop.f32.mrf.mxu0
  %v133 = vadd.f32 %v104, %v132
  %134 = vmatmul.f32.gmra.mxu0 %v74
  %v135 = vpop.f32.mrf.mxu0
  %v136 = vadd.f32 %v107, %v135
  %137 = vdwg.mxu0
  %v138 = vld [vmem:[%s1] sm:$0xff]
  %v139 = vld [vmem:[%s1 + $0x8] sm:$0xff]
  %v140 = vld [vmem:[%s1 + $0x10] sm:$0xff]
  %v141 = vld [vmem:[%s1 + $0x18] sm:$0xff]
  %v142 = vld [vmem:[%s1 + $0x20] sm:$0xff]
  %v143 = vld [vmem:[%s1 + $0x28] sm:$0xff]
  %v144 = vld [vmem:[%s1 + $0x30] sm:$0xff]
  %v145 = vld [vmem:[%s1 + $0x38] sm:$0xff]
  %v147 = vsel %vm63, %v139, 0
  %v150 = vsel %vm63, %v141, 0
  %v153 = vsel %vm63, %v143, 0
  %v156 = vsel %vm63, %v145, 0
  %158 = vmatpush.msra.mxu0 %v38
  %159 = vmatpush.msra.mxu0 %v37
  %160 = vmatpush.msra.mxu0 %v36
  %161 = vmatpush.msra.mxu0 %v35
  %162 = vmatpush.msra.mxu0 %v34
  %163 = vmatpush.msra.mxu0 %v33
  %164 = vmatpush.msra.mxu0 %v32
  %165 = vmatpush.msra.mxu0 %v31
  %166 = vmatpush.msra.mxu0 %v30
  %167 = vmatpush.msra.mxu0 %v29
  %168 = vmatpush.msra.mxu0 %v28
  %169 = vmatpush.msra.mxu0 %v27
  %170 = vmatpush.msra.mxu0 %v26
  %171 = vmatpush.msra.mxu0 %v25
  %172 = vmatpush.msra.mxu0 %v24
  %173 = vmatpush.msra.mxu0 %v23
  %174 = vmatmul.f32.gmra.mxu0 %v138
  %v175 = vpop.f32.mrf.mxu0
  %v176 = vadd.f32 0.0, %v175
  %177 = vmatmul.f32.gmra.mxu0 %v140
  %v178 = vpop.f32.mrf.mxu0
  %v179 = vadd.f32 0.0, %v178
  %180 = vmatmul.f32.gmra.mxu0 %v142
  %v181 = vpop.f32.mrf.mxu0
  %v182 = vadd.f32 0.0, %v181
  %183 = vmatmul.f32.gmra.mxu0 %v144
  %v184 = vpop.f32.mrf.mxu0
  %v185 = vadd.f32 0.0, %v184
  %186 = vdwg.mxu0
  %187 = vmatpush.msra.mxu0 %v78
  %188 = vmatpush.msra.mxu0 %v53
  %189 = vmatpush.msra.mxu0 %v52
  %190 = vmatpush.msra.mxu0 %v51
  %191 = vmatpush.msra.mxu0 %v50
  %192 = vmatpush.msra.mxu0 %v49
  %193 = vmatpush.msra.mxu0 %v48
  %194 = vmatpush.msra.mxu0 %v47
  %195 = vmatpush.msra.mxu0 %v46
  %196 = vmatpush.msra.mxu0 %v45
  %197 = vmatpush.msra.mxu0 %v44
  %198 = vmatpush.msra.mxu0 %v43
  %199 = vmatpush.msra.mxu0 %v42
  %200 = vmatpush.msra.mxu0 %v41
  %201 = vmatpush.msra.mxu0 %v40
  %202 = vmatpush.msra.mxu0 %v39
  %203 = vmatmul.f32.gmra.mxu0 %v147
  %v204 = vpop.f32.mrf.mxu0
  %v205 = vadd.f32 %v176, %v204
  %206 = vmatmul.f32.gmra.mxu0 %v150
  %v207 = vpop.f32.mrf.mxu0
  %v208 = vadd.f32 %v179, %v207
  %209 = vmatmul.f32.gmra.mxu0 %v153
  %v210 = vpop.f32.mrf.mxu0
  %v211 = vadd.f32 %v182, %v210
  %212 = vmatmul.f32.gmra.mxu0 %v156
  %v213 = vpop.f32.mrf.mxu0
  %v214 = vadd.f32 %v185, %v213
  %215 = vdwg.mxu0
  %v216 = vld [vmem:[%s2] sm:$0xff]
  %v217 = vld [vmem:[%s2 + $0x8] sm:$0xff]
  %v218 = vld [vmem:[%s2 + $0x10] sm:$0xff]
  %v219 = vld [vmem:[%s2 + $0x18] sm:$0xff]
  %v220 = vld [vmem:[%s2 + $0x20] sm:$0xff]
  %v221 = vld [vmem:[%s2 + $0x28] sm:$0xff]
  %v222 = vld [vmem:[%s2 + $0x30] sm:$0xff]
  %v223 = vld [vmem:[%s2 + $0x38] sm:$0xff]
  %v225 = vsel %vm63, %v217, 0
  %v228 = vsel %vm63, %v219, 0
  %v231 = vsel %vm63, %v221, 0
  %v234 = vsel %vm63, %v223, 0
  %236 = vmatpush.msra.mxu0 %v38
  %237 = vmatpush.msra.mxu0 %v37
  %238 = vmatpush.msra.mxu0 %v36
  %239 = vmatpush.msra.mxu0 %v35
  %240 = vmatpush.msra.mxu0 %v34
  %241 = vmatpush.msra.mxu0 %v33
  %242 = vmatpush.msra.mxu0 %v32
  %243 = vmatpush.msra.mxu0 %v31
  %244 = vmatpush.msra.mxu0 %v30
  %245 = vmatpush.msra.mxu0 %v29
  %246 = vmatpush.msra.mxu0 %v28
  %247 = vmatpush.msra.mxu0 %v27
  %248 = vmatpush.msra.mxu0 %v26
  %249 = vmatpush.msra.mxu0 %v25
  %250 = vmatpush.msra.mxu0 %v24
  %251 = vmatpush.msra.mxu0 %v23
  %252 = vmatmul.f32.gmra.mxu0 %v216
  %v253 = vpop.f32.mrf.mxu0
  %v254 = vadd.f32 0.0, %v253
  %255 = vmatmul.f32.gmra.mxu0 %v218
  %v256 = vpop.f32.mrf.mxu0
  %v257 = vadd.f32 0.0, %v256
  %258 = vmatmul.f32.gmra.mxu0 %v220
  %v259 = vpop.f32.mrf.mxu0
  %v260 = vadd.f32 0.0, %v259
  %261 = vmatmul.f32.gmra.mxu0 %v222
  %v262 = vpop.f32.mrf.mxu0
  %v263 = vadd.f32 0.0, %v262
  %264 = vdwg.mxu0
  %265 = vmatpush.msra.mxu0 %v78
  %266 = vmatpush.msra.mxu0 %v53
  %267 = vmatpush.msra.mxu0 %v52
  %268 = vmatpush.msra.mxu0 %v51
  %269 = vmatpush.msra.mxu0 %v50
  %270 = vmatpush.msra.mxu0 %v49
  %271 = vmatpush.msra.mxu0 %v48
  %272 = vmatpush.msra.mxu0 %v47
  %273 = vmatpush.msra.mxu0 %v46
  %274 = vmatpush.msra.mxu0 %v45
  %275 = vmatpush.msra.mxu0 %v44
  %276 = vmatpush.msra.mxu0 %v43
  %277 = vmatpush.msra.mxu0 %v42
  %278 = vmatpush.msra.mxu0 %v41
  %279 = vmatpush.msra.mxu0 %v40
  %280 = vmatpush.msra.mxu0 %v39
  %281 = vmatmul.f32.gmra.mxu0 %v225
  %v282 = vpop.f32.mrf.mxu0
  %v283 = vadd.f32 %v254, %v282
  %284 = vmatmul.f32.gmra.mxu0 %v228
  %v285 = vpop.f32.mrf.mxu0
  %v286 = vadd.f32 %v257, %v285
  %287 = vmatmul.f32.gmra.mxu0 %v231
  %v288 = vpop.f32.mrf.mxu0
  %v289 = vadd.f32 %v260, %v288
  %290 = vmatmul.f32.gmra.mxu0 %v234
  %v291 = vpop.f32.mrf.mxu0
  %v292 = vadd.f32 %v263, %v291
  %293 = vdwg.mxu0
  %v294 = vld [vmem:[%s3] sm:$0xff]
  %v295 = vld [vmem:[%s3 + $0x8] sm:$0xff]
  %v296 = vld [vmem:[%s3 + $0x10] sm:$0xff]
  %v297 = vld [vmem:[%s3 + $0x18] sm:$0xff]
  %v298 = vld [vmem:[%s3 + $0x20] sm:$0xff]
  %v299 = vld [vmem:[%s3 + $0x28] sm:$0xff]
  %v300 = vld [vmem:[%s3 + $0x30] sm:$0xff]
  %v301 = vld [vmem:[%s3 + $0x38] sm:$0xff]
  %v303 = vsel %vm63, %v295, 0
  %v306 = vsel %vm63, %v297, 0
  %v309 = vsel %vm63, %v299, 0
  %v312 = vsel %vm63, %v301, 0
  %314 = vmatpush.msra.mxu0 %v38
  %315 = vmatpush.msra.mxu0 %v37
  %316 = vmatpush.msra.mxu0 %v36
  %317 = vmatpush.msra.mxu0 %v35
  %318 = vmatpush.msra.mxu0 %v34
  %319 = vmatpush.msra.mxu0 %v33
  %320 = vmatpush.msra.mxu0 %v32
  %321 = vmatpush.msra.mxu0 %v31
  %322 = vmatpush.msra.mxu0 %v30
  %323 = vmatpush.msra.mxu0 %v29
  %324 = vmatpush.msra.mxu0 %v28
  %325 = vmatpush.msra.mxu0 %v27
  %326 = vmatpush.msra.mxu0 %v26
  %327 = vmatpush.msra.mxu0 %v25
  %328 = vmatpush.msra.mxu0 %v24
  %329 = vmatpush.msra.mxu0 %v23
  %330 = vmatmul.f32.gmra.mxu0 %v294
  %v331 = vpop.f32.mrf.mxu0
  %v332 = vadd.f32 0.0, %v331
  %333 = vmatmul.f32.gmra.mxu0 %v296
  %v334 = vpop.f32.mrf.mxu0
  %v335 = vadd.f32 0.0, %v334
  %336 = vmatmul.f32.gmra.mxu0 %v298
  %v337 = vpop.f32.mrf.mxu0
  %v338 = vadd.f32 0.0, %v337
  %339 = vmatmul.f32.gmra.mxu0 %v300
  %v340 = vpop.f32.mrf.mxu0
  %v341 = vadd.f32 0.0, %v340
  %342 = vdwg.mxu0
  %343 = vmatpush.msra.mxu0 %v78
  %344 = vmatpush.msra.mxu0 %v53
  %345 = vmatpush.msra.mxu0 %v52
  %346 = vmatpush.msra.mxu0 %v51
  %347 = vmatpush.msra.mxu0 %v50
  %348 = vmatpush.msra.mxu0 %v49
  %349 = vmatpush.msra.mxu0 %v48
  %350 = vmatpush.msra.mxu0 %v47
  %351 = vmatpush.msra.mxu0 %v46
  %352 = vmatpush.msra.mxu0 %v45
  %353 = vmatpush.msra.mxu0 %v44
  %354 = vmatpush.msra.mxu0 %v43
  %355 = vmatpush.msra.mxu0 %v42
  %356 = vmatpush.msra.mxu0 %v41
  %357 = vmatpush.msra.mxu0 %v40
  %358 = vmatpush.msra.mxu0 %v39
  %359 = vmatmul.f32.gmra.mxu0 %v303
  %v360 = vpop.f32.mrf.mxu0
  %v361 = vadd.f32 %v332, %v360
  %362 = vmatmul.f32.gmra.mxu0 %v306
  %v363 = vpop.f32.mrf.mxu0
  %v364 = vadd.f32 %v335, %v363
  %365 = vmatmul.f32.gmra.mxu0 %v309
  %v366 = vpop.f32.mrf.mxu0
  %v367 = vadd.f32 %v338, %v366
  %368 = vmatmul.f32.gmra.mxu0 %v312
  %v369 = vpop.f32.mrf.mxu0
  %v370 = vadd.f32 %v341, %v369
  %371 = vdwg.mxu0
  %v372 = vmax.f32 %v127, %v205
  %v373 = vmax.f32 %v130, %v208
  %v374 = vmax.f32 %v133, %v211
  %v375 = vmax.f32 %v136, %v214
  %v376 = vmax.f32 %v283, %v361
  %v377 = vmax.f32 %v286, %v364
  %v378 = vmax.f32 %v289, %v367
  %v379 = vmax.f32 %v292, %v370
  %v380 = vmax.f32 %v372, %v376
  %v381 = vmax.f32 %v373, %v377
  %v382 = vmax.f32 %v374, %v378
  %v383 = vmax.f32 %v375, %v379
  %v384 = vld [vmem:[%s5] sm:$0x1]
  %v386 = vperm.slane %v384, 0
  %v388 = vadd.f32 %v380, %v386
  %v389 = vadd.f32 %v381, %v386
  %v390 = vadd.f32 %v382, %v386
  %v391 = vadd.f32 %v383, %v386
  %v392 = vmax.f32 %v388, 0.0
  %v393 = vmax.f32 %v389, 0.0
  %v394 = vmax.f32 %v390, 0.0
  %v395 = vmax.f32 %v391, 0.0
  %396 = vst [vmem:[%s6] sm:$0xff] %v392
  %397 = vst [vmem:[%s6 + $0x8] sm:$0xff] %v393
  %398 = vst [vmem:[%s6 + $0x10] sm:$0xff] %v394
  %399 = vst [vmem:[%s6 + $0x18] sm:$0xff] %v395
  // Predicated region
  $region26: #{mnist_classifier_forward.4} parent=0 // pred_check
    _
  $region27: #{mnist_classifier_forward.4} parent=0 // pred_check_branch
    %401 = sbr.rel (0) target = $region29
  $region28: #{mnist_classifier_forward.4} parent=0 // pred_region
    _
  $region29: #{mnist_classifier_forward.4} parent=0 // pred_fallthru
    _
  // Predicated region
  $region30: #{mnist_classifier_forward.4} parent=0 // pred_check
    _
  $region31: #{mnist_classifier_forward.4} parent=0 // pred_check_branch
    %403 = sbr.rel (0) target = $region33
  $region32: #{mnist_classifier_forward.4} parent=0 // pred_region
    _
  $region33: #{mnist_classifier_forward.4} parent=0 // pred_fallthru
    _

// kernel: mnist_classifier_forward.5
$region0: #{mnist_classifier_forward.5}
  #allocation0 [shape = 'u32[]', space=smem, size = 0x4, offset = 0x4, fixed_abs, tag = 'smem constant byte address 0x4 - core index']
  #allocation1 [shape = 'u32[72,128]{1,0:T(1,128)}', space=vmem, size = 0x9000, scoped, tag = 'internal scratch']
  %s0 = inlined_call_operand.vmem [shape: f32[2,2048], index: 0, kind: input, shape index: {}]
  %s1 = inlined_call_operand.vmem [shape: f32[2048,128], index: 1, kind: input, shape index: {}]
  %s2 = inlined_call_operand.vmem [shape: f32[1,128], index: 2, kind: input, shape index: {}]
  %s3 = inlined_call_operand.vmem [shape: f32[128,128], index: 3, kind: input, shape index: {}]
  %s4 = inlined_call_operand.vmem [shape: f32[1,128], index: 4, kind: input, shape index: {}]
  %s5 = inlined_call_operand.hbm [shape: f32[2,128], index: 5, kind: output, shape index: {}]
  %s6 = sld [smem:[#allocation0]]
  $region30: #{mnist_classifier_forward.5} parent=0
    _
  %s8 = ssub.s32 1, %s6
  %s9 = scalar_select 0, %s8, %s6
  $region1: #{mnist_classifier_forward.5} parent=0
    #allocation2 [shape = 'u8[1024]{0}', space=vmem, size = 0x400, scoped, tag = 'output window, operand 0, single buffered']
    #allocation3 [shape = 's32[1]{0}', space=sflag, size = 0x4, scoped, tag = 'scoped memory for mnist_classifier_forward.5']
    %10 = vsyncpa [#allocation3], 0
    // Predicated region
    $region2: #{mnist_classifier_forward.5} parent=1 // pred_check
      _
    $region3: #{mnist_classifier_forward.5} parent=1 // pred_check_branch
      %12 = sbr.rel (0) target = $region5
    $region4: #{mnist_classifier_forward.5} parent=1 // pred_region
      _
    $region5: #{mnist_classifier_forward.5} parent=1 // pred_fallthru
      _
    // Predicated region
    $region6: #{mnist_classifier_forward.5} parent=1 // pred_check
      _
    $region7: #{mnist_classifier_forward.5} parent=1 // pred_check_branch
      %14 = sbr.rel (0) target = $region9
    $region8: #{mnist_classifier_forward.5} parent=1 // pred_region
      _
    $region9: #{mnist_classifier_forward.5} parent=1 // pred_fallthru
      _
    // Predicated region
    $region10: #{mnist_classifier_forward.5} parent=1 // pred_check
      _
    $region11: #{mnist_classifier_forward.5} parent=1 // pred_check_branch
      %16 = sbr.rel (0) target = $region13
    $region12: #{mnist_classifier_forward.5} parent=1 // pred_region
      _
    $region13: #{mnist_classifier_forward.5} parent=1 // pred_fallthru
      _
    // Predicated region
    $region14: #{mnist_classifier_forward.5} parent=1 // pred_check
      _
    $region15: #{mnist_classifier_forward.5} parent=1 // pred_check_branch
      %18 = sbr.rel (0) target = $region17
    $region16: #{mnist_classifier_forward.5} parent=1 // pred_region
      _
    $region17: #{mnist_classifier_forward.5} parent=1 // pred_fallthru
      _
    // Predicated region
    $region18: #{mnist_classifier_forward.5} parent=1 // pred_check
      _
    $region19: #{mnist_classifier_forward.5} parent=1 // pred_check_branch
      %20 = sbr.rel (0) target = $region21
    $region20: #{mnist_classifier_forward.5} parent=1 // pred_region
      _
    $region21: #{mnist_classifier_forward.5} parent=1 // pred_fallthru
      _
    %v21 = vld [vmem:[%s0] sm:$0xff]
    %v22 = vld [vmem:[%s0 + $0x8] sm:$0xff]
    %v23 = vld [vmem:[%s0 + $0x10] sm:$0xff]
    %v24 = vld [vmem:[%s0 + $0x18] sm:$0xff]
    %v25 = vld [vmem:[%s1] sm:$0xff]
    %v26 = vld [vmem:[%s1 + $0x8] sm:$0xff]
    %v27 = vld [vmem:[%s1 + $0x10] sm:$0xff]
    %v28 = vld [vmem:[%s1 + $0x18] sm:$0xff]
    %v29 = vld [vmem:[%s1 + $0x20] sm:$0xff]
    %v30 = vld [vmem:[%s1 + $0x28] sm:$0xff]
    %v31 = vld [vmem:[%s1 + $0x30] sm:$0xff]
    %v32 = vld [vmem:[%s1 + $0x38] sm:$0xff]
    %v33 = vld [vmem:[%s1 + $0x40] sm:$0xff]
    %v34 = vld [vmem:[%s1 + $0x48] sm:$0xff]
    %v35 = vld [vmem:[%s1 + $0x50] sm:$0xff]
    %v36 = vld [vmem:[%s1 + $0x58] sm:$0xff]
    %v37 = vld [vmem:[%s1 + $0x60] sm:$0xff]
    %v38 = vld [vmem:[%s1 + $0x68] sm:$0xff]
    %v39 = vld [vmem:[%s1 + $0x70] sm:$0xff]
    %v40 = vld [vmem:[%s1 + $0x78] sm:$0xff]
    %v41 = vld [vmem:[%s1 + $0x80] sm:$0xff]
    %v42 = vld [vmem:[%s1 + $0x88] sm:$0xff]
    %v43 = vld [vmem:[%s1 + $0x90] sm:$0xff]
    %v44 = vld [vmem:[%s1 + $0x98] sm:$0xff]
    %v45 = vld [vmem:[%s1 + $0xa0] sm:$0xff]
    %v46 = vld [vmem:[%s1 + $0xa8] sm:$0xff]
    %v47 = vld [vmem:[%s1 + $0xb0] sm:$0xff]
    %v48 = vld [vmem:[%s1 + $0xb8] sm:$0xff]
    %v49 = vld [vmem:[%s1 + $0xc0] sm:$0xff]
    %v50 = vld [vmem:[%s1 + $0xc8] sm:$0xff]
    %v51 = vld [vmem:[%s1 + $0xd0] sm:$0xff]
    %v52 = vld [vmem:[%s1 + $0xd8] sm:$0xff]
    %v53 = vld [vmem:[%s1 + $0xe0] sm:$0xff]
    %v54 = vld [vmem:[%s1 + $0xe8] sm:$0xff]
    %v55 = vld [vmem:[%s1 + $0xf0] sm:$0xff]
    %v56 = vld [vmem:[%s1 + $0xf8] sm:$0xff]
    %v57 = vld [vmem:[%s1 + $0x100] sm:$0xff]
    %v58 = vld [vmem:[%s1 + $0x108] sm:$0xff]
    %v59 = vld [vmem:[%s1 + $0x110] sm:$0xff]
    %v60 = vld [vmem:[%s1 + $0x118] sm:$0xff]
    %v61 = vld [vmem:[%s1 + $0x120] sm:$0xff]
    %v62 = vld [vmem:[%s1 + $0x128] sm:$0xff]
    %v63 = vld [vmem:[%s1 + $0x130] sm:$0xff]
    %v64 = vld [vmem:[%s1 + $0x138] sm:$0xff]
    %v65 = vld [vmem:[%s1 + $0x140] sm:$0xff]
    %v66 = vld [vmem:[%s1 + $0x148] sm:$0xff]
    %v67 = vld [vmem:[%s1 + $0x150] sm:$0xff]
    %v68 = vld [vmem:[%s1 + $0x158] sm:$0xff]
    %v69 = vld [vmem:[%s1 + $0x160] sm:$0xff]
    %v70 = vld [vmem:[%s1 + $0x168] sm:$0xff]
    %v71 = vld [vmem:[%s1 + $0x170] sm:$0xff]
    %v72 = vld [vmem:[%s1 + $0x178] sm:$0xff]
    %v73 = vld [vmem:[%s1 + $0x180] sm:$0xff]
    %v74 = vld [vmem:[%s1 + $0x188] sm:$0xff]
    %v75 = vld [vmem:[%s1 + $0x190] sm:$0xff]
    %v76 = vld [vmem:[%s1 + $0x198] sm:$0xff]
    %v77 = vld [vmem:[%s1 + $0x1a0] sm:$0xff]
    %v78 = vld [vmem:[%s1 + $0x1a8] sm:$0xff]
    %v79 = vld [vmem:[%s1 + $0x1b0] sm:$0xff]
    %v80 = vld [vmem:[%s1 + $0x1b8] sm:$0xff]
    %v81 = vld [vmem:[%s1 + $0x1c0] sm:$0xff]
    %v82 = vld [vmem:[%s1 + $0x1c8] sm:$0xff]
    %v83 = vld [vmem:[%s1 + $0x1d0] sm:$0xff]
    %v84 = vld [vmem:[%s1 + $0x1d8] sm:$0xff]
    %v85 = vld [vmem:[%s1 + $0x1e0] sm:$0xff]
    %v86 = vld [vmem:[%s1 + $0x1e8] sm:$0xff]
    %v87 = vld [vmem:[%s1 + $0x1f0] sm:$0xff]
    %v88 = vld [vmem:[%s1 + $0x1f8] sm:$0xff]
    %v89 = vld [vmem:[%s1 + $0x200] sm:$0xff]
    %v90 = vld [vmem:[%s1 + $0x208] sm:$0xff]
    %v91 = vld [vmem:[%s1 + $0x210] sm:$0xff]
    %v92 = vld [vmem:[%s1 + $0x218] sm:$0xff]
    %v93 = vld [vmem:[%s1 + $0x220] sm:$0xff]
    %v94 = vld [vmem:[%s1 + $0x228] sm:$0xff]
    %v95 = vld [vmem:[%s1 + $0x230] sm:$0xff]
    %v96 = vld [vmem:[%s1 + $0x238] sm:$0xff]
    %v97 = vld [vmem:[%s1 + $0x240] sm:$0xff]
    %v98 = vld [vmem:[%s1 + $0x248] sm:$0xff]
    %v99 = vld [vmem:[%s1 + $0x250] sm:$0xff]
    %v100 = vld [vmem:[%s1 + $0x258] sm:$0xff]
    %v101 = vld [vmem:[%s1 + $0x260] sm:$0xff]
    %v102 = vld [vmem:[%s1 + $0x268] sm:$0xff]
    %v103 = vld [vmem:[%s1 + $0x270] sm:$0xff]
    %v104 = vld [vmem:[%s1 + $0x278] sm:$0xff]
    %v105 = vld [vmem:[%s1 + $0x280] sm:$0xff]
    %v106 = vld [vmem:[%s1 + $0x288] sm:$0xff]
    %v107 = vld [vmem:[%s1 + $0x290] sm:$0xff]
    %v108 = vld [vmem:[%s1 + $0x298] sm:$0xff]
    %v109 = vld [vmem:[%s1 + $0x2a0] sm:$0xff]
    %v110 = vld [vmem:[%s1 + $0x2a8] sm:$0xff]
    %v111 = vld [vmem:[%s1 + $0x2b0] sm:$0xff]
    %v112 = vld [vmem:[%s1 + $0x2b8] sm:$0xff]
    %v113 = vld [vmem:[%s1 + $0x2c0] sm:$0xff]
    %v114 = vld [vmem:[%s1 + $0x2c8] sm:$0xff]
    %v115 = vld [vmem:[%s1 + $0x2d0] sm:$0xff]
    %v116 = vld [vmem:[%s1 + $0x2d8] sm:$0xff]
    %v117 = vld [vmem:[%s1 + $0x2e0] sm:$0xff]
    %v118 = vld [vmem:[%s1 + $0x2e8] sm:$0xff]
    %v119 = vld [vmem:[%s1 + $0x2f0] sm:$0xff]
    %v120 = vld [vmem:[%s1 + $0x2f8] sm:$0xff]
    %v121 = vld [vmem:[%s1 + $0x300] sm:$0xff]
    %v122 = vld [vmem:[%s1 + $0x308] sm:$0xff]
    %v123 = vld [vmem:[%s1 + $0x310] sm:$0xff]
    %v124 = vld [vmem:[%s1 + $0x318] sm:$0xff]
    %v125 = vld [vmem:[%s1 + $0x320] sm:$0xff]
    %v126 = vld [vmem:[%s1 + $0x328] sm:$0xff]
    %v127 = vld [vmem:[%s1 + $0x330] sm:$0xff]
    %v128 = vld [vmem:[%s1 + $0x338] sm:$0xff]
    %v129 = vld [vmem:[%s1 + $0x340] sm:$0xff]
    %v130 = vld [vmem:[%s1 + $0x348] sm:$0xff]
    %v131 = vld [vmem:[%s1 + $0x350] sm:$0xff]
    %v132 = vld [vmem:[%s1 + $0x358] sm:$0xff]
    %v133 = vld [vmem:[%s1 + $0x360] sm:$0xff]
    %v134 = vld [vmem:[%s1 + $0x368] sm:$0xff]
    %v135 = vld [vmem:[%s1 + $0x370] sm:$0xff]
    %v136 = vld [vmem:[%s1 + $0x378] sm:$0xff]
    %v137 = vld [vmem:[%s1 + $0x380] sm:$0xff]
    %v138 = vld [vmem:[%s1 + $0x388] sm:$0xff]
    %v139 = vld [vmem:[%s1 + $0x390] sm:$0xff]
    %v140 = vld [vmem:[%s1 + $0x398] sm:$0xff]
    %v141 = vld [vmem:[%s1 + $0x3a0] sm:$0xff]
    %v142 = vld [vmem:[%s1 + $0x3a8] sm:$0xff]
    %v143 = vld [vmem:[%s1 + $0x3b0] sm:$0xff]
    %v144 = vld [vmem:[%s1 + $0x3b8] sm:$0xff]
    %v145 = vld [vmem:[%s1 + $0x3c0] sm:$0xff]
    %v146 = vld [vmem:[%s1 + $0x3c8] sm:$0xff]
    %v147 = vld [vmem:[%s1 + $0x3d0] sm:$0xff]
    %v148 = vld [vmem:[%s1 + $0x3d8] sm:$0xff]
    %v149 = vld [vmem:[%s1 + $0x3e0] sm:$0xff]
    %v150 = vld [vmem:[%s1 + $0x3e8] sm:$0xff]
    %v151 = vld [vmem:[%s1 + $0x3f0] sm:$0xff]
    %v152 = vld [vmem:[%s1 + $0x3f8] sm:$0xff]
    %v153 = vld [vmem:[%s1 + $0x400] sm:$0xff]
    %v154 = vld [vmem:[%s1 + $0x408] sm:$0xff]
    %v155 = vld [vmem:[%s1 + $0x410] sm:$0xff]
    %v156 = vld [vmem:[%s1 + $0x418] sm:$0xff]
    %v157 = vld [vmem:[%s1 + $0x420] sm:$0xff]
    %v158 = vld [vmem:[%s1 + $0x428] sm:$0xff]
    %v159 = vld [vmem:[%s1 + $0x430] sm:$0xff]
    %v160 = vld [vmem:[%s1 + $0x438] sm:$0xff]
    %v161 = vld [vmem:[%s1 + $0x440] sm:$0xff]
    %v162 = vld [vmem:[%s1 + $0x448] sm:$0xff]
    %v163 = vld [vmem:[%s1 + $0x450] sm:$0xff]
    %v164 = vld [vmem:[%s1 + $0x458] sm:$0xff]
    %v165 = vld [vmem:[%s1 + $0x460] sm:$0xff]
    %v166 = vld [vmem:[%s1 + $0x468] sm:$0xff]
    %v167 = vld [vmem:[%s1 + $0x470] sm:$0xff]
    %v168 = vld [vmem:[%s1 + $0x478] sm:$0xff]
    %v169 = vld [vmem:[%s1 + $0x480] sm:$0xff]
    %v170 = vld [vmem:[%s1 + $0x488] sm:$0xff]
    %v171 = vld [vmem:[%s1 + $0x490] sm:$0xff]
    %v172 = vld [vmem:[%s1 + $0x498] sm:$0xff]
    %v173 = vld [vmem:[%s1 + $0x4a0] sm:$0xff]
    %v174 = vld [vmem:[%s1 + $0x4a8] sm:$0xff]
    %v175 = vld [vmem:[%s1 + $0x4b0] sm:$0xff]
    %v176 = vld [vmem:[%s1 + $0x4b8] sm:$0xff]
    %v177 = vld [vmem:[%s1 + $0x4c0] sm:$0xff]
    %v178 = vld [vmem:[%s1 + $0x4c8] sm:$0xff]
    %v179 = vld [vmem:[%s1 + $0x4d0] sm:$0xff]
    %v180 = vld [vmem:[%s1 + $0x4d8] sm:$0xff]
    %v181 = vld [vmem:[%s1 + $0x4e0] sm:$0xff]
    %v182 = vld [vmem:[%s1 + $0x4e8] sm:$0xff]
    %v183 = vld [vmem:[%s1 + $0x4f0] sm:$0xff]
    %v184 = vld [vmem:[%s1 + $0x4f8] sm:$0xff]
    %v185 = vld [vmem:[%s1 + $0x500] sm:$0xff]
    %v186 = vld [vmem:[%s1 + $0x508] sm:$0xff]
    %v187 = vld [vmem:[%s1 + $0x510] sm:$0xff]
    %v188 = vld [vmem:[%s1 + $0x518] sm:$0xff]
    %v189 = vld [vmem:[%s1 + $0x520] sm:$0xff]
    %v190 = vld [vmem:[%s1 + $0x528] sm:$0xff]
    %v191 = vld [vmem:[%s1 + $0x530] sm:$0xff]
    %v192 = vld [vmem:[%s1 + $0x538] sm:$0xff]
    %v193 = vld [vmem:[%s1 + $0x540] sm:$0xff]
    %v194 = vld [vmem:[%s1 + $0x548] sm:$0xff]
    %v195 = vld [vmem:[%s1 + $0x550] sm:$0xff]
    %v196 = vld [vmem:[%s1 + $0x558] sm:$0xff]
    %v197 = vld [vmem:[%s1 + $0x560] sm:$0xff]
    %v198 = vld [vmem:[%s1 + $0x568] sm:$0xff]
    %v199 = vld [vmem:[%s1 + $0x570] sm:$0xff]
    %v200 = vld [vmem:[%s1 + $0x578] sm:$0xff]
    %v201 = vld [vmem:[%s1 + $0x580] sm:$0xff]
    %v202 = vld [vmem:[%s1 + $0x588] sm:$0xff]
    %v203 = vld [vmem:[%s1 + $0x590] sm:$0xff]
    %v204 = vld [vmem:[%s1 + $0x598] sm:$0xff]
    %v205 = vld [vmem:[%s1 + $0x5a0] sm:$0xff]
    %v206 = vld [vmem:[%s1 + $0x5a8] sm:$0xff]
    %v207 = vld [vmem:[%s1 + $0x5b0] sm:$0xff]
    %v208 = vld [vmem:[%s1 + $0x5b8] sm:$0xff]
    %v209 = vld [vmem:[%s1 + $0x5c0] sm:$0xff]
    %v210 = vld [vmem:[%s1 + $0x5c8] sm:$0xff]
    %v211 = vld [vmem:[%s1 + $0x5d0] sm:$0xff]
    %v212 = vld [vmem:[%s1 + $0x5d8] sm:$0xff]
    %v213 = vld [vmem:[%s1 + $0x5e0] sm:$0xff]
    %v214 = vld [vmem:[%s1 + $0x5e8] sm:$0xff]
    %v215 = vld [vmem:[%s1 + $0x5f0] sm:$0xff]
    %v216 = vld [vmem:[%s1 + $0x5f8] sm:$0xff]
    %v217 = vld [vmem:[%s1 + $0x600] sm:$0xff]
    %v218 = vld [vmem:[%s1 + $0x608] sm:$0xff]
    %v219 = vld [vmem:[%s1 + $0x610] sm:$0xff]
    %v220 = vld [vmem:[%s1 + $0x618] sm:$0xff]
    %v221 = vld [vmem:[%s1 + $0x620] sm:$0xff]
    %v222 = vld [vmem:[%s1 + $0x628] sm:$0xff]
    %v223 = vld [vmem:[%s1 + $0x630] sm:$0xff]
    %v224 = vld [vmem:[%s1 + $0x638] sm:$0xff]
    %v225 = vld [vmem:[%s1 + $0x640] sm:$0xff]
    %v226 = vld [vmem:[%s1 + $0x648] sm:$0xff]
    %v227 = vld [vmem:[%s1 + $0x650] sm:$0xff]
    %v228 = vld [vmem:[%s1 + $0x658] sm:$0xff]
    %v229 = vld [vmem:[%s1 + $0x660] sm:$0xff]
    %v230 = vld [vmem:[%s1 + $0x668] sm:$0xff]
    %v231 = vld [vmem:[%s1 + $0x670] sm:$0xff]
    %v232 = vld [vmem:[%s1 + $0x678] sm:$0xff]
    %v233 = vld [vmem:[%s1 + $0x680] sm:$0xff]
    %v234 = vld [vmem:[%s1 + $0x688] sm:$0xff]
    %v235 = vld [vmem:[%s1 + $0x690] sm:$0xff]
    %v236 = vld [vmem:[%s1 + $0x698] sm:$0xff]
    %v237 = vld [vmem:[%s1 + $0x6a0] sm:$0xff]
    %v238 = vld [vmem:[%s1 + $0x6a8] sm:$0xff]
    %v239 = vld [vmem:[%s1 + $0x6b0] sm:$0xff]
    %v240 = vld [vmem:[%s1 + $0x6b8] sm:$0xff]
    %v241 = vld [vmem:[%s1 + $0x6c0] sm:$0xff]
    %v242 = vld [vmem:[%s1 + $0x6c8] sm:$0xff]
    %v243 = vld [vmem:[%s1 + $0x6d0] sm:$0xff]
    %v244 = vld [vmem:[%s1 + $0x6d8] sm:$0xff]
    %v245 = vld [vmem:[%s1 + $0x6e0] sm:$0xff]
    %v246 = vld [vmem:[%s1 + $0x6e8] sm:$0xff]
    %v247 = vld [vmem:[%s1 + $0x6f0] sm:$0xff]
    %v248 = vld [vmem:[%s1 + $0x6f8] sm:$0xff]
    %v249 = vld [vmem:[%s1 + $0x700] sm:$0xff]
    %v250 = vld [vmem:[%s1 + $0x708] sm:$0xff]
    %v251 = vld [vmem:[%s1 + $0x710] sm:$0xff]
    %v252 = vld [vmem:[%s1 + $0x718] sm:$0xff]
    %v253 = vld [vmem:[%s1 + $0x720] sm:$0xff]
    %v254 = vld [vmem:[%s1 + $0x728] sm:$0xff]
    %v255 = vld [vmem:[%s1 + $0x730] sm:$0xff]
    %v256 = vld [vmem:[%s1 + $0x738] sm:$0xff]
    %v257 = vld [vmem:[%s1 + $0x740] sm:$0xff]
    %v258 = vld [vmem:[%s1 + $0x748] sm:$0xff]
    %v259 = vld [vmem:[%s1 + $0x750] sm:$0xff]
    %v260 = vld [vmem:[%s1 + $0x758] sm:$0xff]
    %v261 = vld [vmem:[%s1 + $0x760] sm:$0xff]
    %v262 = vld [vmem:[%s1 + $0x768] sm:$0xff]
    %v263 = vld [vmem:[%s1 + $0x770] sm:$0xff]
    %v264 = vld [vmem:[%s1 + $0x778] sm:$0xff]
    %v265 = vld [vmem:[%s1 + $0x780] sm:$0xff]
    %v266 = vld [vmem:[%s1 + $0x788] sm:$0xff]
    %v267 = vld [vmem:[%s1 + $0x790] sm:$0xff]
    %v268 = vld [vmem:[%s1 + $0x798] sm:$0xff]
    %v269 = vld [vmem:[%s1 + $0x7a0] sm:$0xff]
    %v270 = vld [vmem:[%s1 + $0x7a8] sm:$0xff]
    %v271 = vld [vmem:[%s1 + $0x7b0] sm:$0xff]
    %v272 = vld [vmem:[%s1 + $0x7b8] sm:$0xff]
    %v273 = vld [vmem:[%s1 + $0x7c0] sm:$0xff]
    %v274 = vld [vmem:[%s1 + $0x7c8] sm:$0xff]
    %v275 = vld [vmem:[%s1 + $0x7d0] sm:$0xff]
    %v276 = vld [vmem:[%s1 + $0x7d8] sm:$0xff]
    %v277 = vld [vmem:[%s1 + $0x7e0] sm:$0xff]
    %v278 = vld [vmem:[%s1 + $0x7e8] sm:$0xff]
    %v279 = vld [vmem:[%s1 + $0x7f0] sm:$0xff]
    %v280 = vld [vmem:[%s1 + $0x7f8] sm:$0xff]
    %v281 = vld [vmem:[%s2] sm:$0x1]
    %v283 = vperm.slane %v281, 0
    %289 = vst [vmem:[#allocation1] ss:$4 sm:$0xff] %v21
    %s290 = scalar_lea.vmem [#allocation1], 32
    %291 = vst [vmem:[%s290] ss:$4 sm:$0xff] %v22
    %v292 = vld.sshfl [vmem:[#allocation1] sm:$0xff pattern:$0x73625140]
    %v293 = vld.sshfl [vmem:[#allocation1 + $0x8] sm:$0xff pattern:$0x73625140]
    %v294 = vld.sshfl [vmem:[#allocation1 + $0x10] sm:$0xff pattern:$0x73625140]
    %v295 = vld.sshfl [vmem:[#allocation1 + $0x18] sm:$0xff pattern:$0x73625140]
    %v296 = vld.sshfl [vmem:[#allocation1 + $0x20] sm:$0xff pattern:$0x73625140]
    %v297 = vld.sshfl [vmem:[#allocation1 + $0x28] sm:$0xff pattern:$0x73625140]
    %v298 = vld.sshfl [vmem:[#allocation1 + $0x30] sm:$0xff pattern:$0x73625140]
    %v299 = vld.sshfl [vmem:[#allocation1 + $0x38] sm:$0xff pattern:$0x73625140]
    %300 = vst [vmem:[#allocation1] ss:$4 sm:$0xff] %v23
    %301 = vst [vmem:[%s290] ss:$4 sm:$0xff] %v24
    %v302 = vld.sshfl [vmem:[#allocation1] sm:$0xff pattern:$0x73625140]
    %v303 = vld.sshfl [vmem:[#allocation1 + $0x8] sm:$0xff pattern:$0x73625140]
    %v304 = vld.sshfl [vmem:[#allocation1 + $0x10] sm:$0xff pattern:$0x73625140]
    %v305 = vld.sshfl [vmem:[#allocation1 + $0x18] sm:$0xff pattern:$0x73625140]
    %v306 = vld.sshfl [vmem:[#allocation1 + $0x20] sm:$0xff pattern:$0x73625140]
    %v307 = vld.sshfl [vmem:[#allocation1 + $0x28] sm:$0xff pattern:$0x73625140]
    %v308 = vld.sshfl [vmem:[#allocation1 + $0x30] sm:$0xff pattern:$0x73625140]
    %v309 = vld.sshfl [vmem:[#allocation1 + $0x38] sm:$0xff pattern:$0x73625140]
    %326 = vmatpush.msra.mxu0 %v40
    %327 = vmatpush.msra.mxu0 %v39
    %328 = vmatpush.msra.mxu0 %v38
    %329 = vmatpush.msra.mxu0 %v37
    %330 = vmatpush.msra.mxu0 %v36
    %331 = vmatpush.msra.mxu0 %v35
    %332 = vmatpush.msra.mxu0 %v34
    %333 = vmatpush.msra.mxu0 %v33
    %334 = vmatpush.msra.mxu0 %v32
    %335 = vmatpush.msra.mxu0 %v31
    %336 = vmatpush.msra.mxu0 %v30
    %337 = vmatpush.msra.mxu0 %v29
    %338 = vmatpush.msra.mxu0 %v28
    %339 = vmatpush.msra.mxu0 %v27
    %340 = vmatpush.msra.mxu0 %v26
    %341 = vmatpush.msra.mxu0 %v25
    %342 = vmatmul.f32.gmra.mxu0 %v292
    %v343 = vpop.f32.mrf.mxu0
    %v344 = vadd.f32 %v283, %v343
    %345 = vdwg.mxu0
    %346 = vmatpush.msra.mxu0 %v56
    %347 = vmatpush.msra.mxu0 %v55
    %348 = vmatpush.msra.mxu0 %v54
    %349 = vmatpush.msra.mxu0 %v53
    %350 = vmatpush.msra.mxu0 %v52
    %351 = vmatpush.msra.mxu0 %v51
    %352 = vmatpush.msra.mxu0 %v50
    %353 = vmatpush.msra.mxu0 %v49
    %354 = vmatpush.msra.mxu0 %v48
    %355 = vmatpush.msra.mxu0 %v47
    %356 = vmatpush.msra.mxu0 %v46
    %357 = vmatpush.msra.mxu0 %v45
    %358 = vmatpush.msra.mxu0 %v44
    %359 = vmatpush.msra.mxu0 %v43
    %360 = vmatpush.msra.mxu0 %v42
    %361 = vmatpush.msra.mxu0 %v41
    %362 = vmatmul.f32.gmra.mxu0 %v293
    %v363 = vpop.f32.mrf.mxu0
    %v364 = vadd.f32 %v344, %v363
    %365 = vdwg.mxu0
    %366 = vmatpush.msra.mxu0 %v72
    %367 = vmatpush.msra.mxu0 %v71
    %368 = vmatpush.msra.mxu0 %v70
    %369 = vmatpush.msra.mxu0 %v69
    %370 = vmatpush.msra.mxu0 %v68
    %371 = vmatpush.msra.mxu0 %v67
    %372 = vmatpush.msra.mxu0 %v66
    %373 = vmatpush.msra.mxu0 %v65
    %374 = vmatpush.msra.mxu0 %v64
    %375 = vmatpush.msra.mxu0 %v63
    %376 = vmatpush.msra.mxu0 %v62
    %377 = vmatpush.msra.mxu0 %v61
    %378 = vmatpush.msra.mxu0 %v60
    %379 = vmatpush.msra.mxu0 %v59
    %380 = vmatpush.msra.mxu0 %v58
    %381 = vmatpush.msra.mxu0 %v57
    %382 = vmatmul.f32.gmra.mxu0 %v294
    %v383 = vpop.f32.mrf.mxu0
    %v384 = vadd.f32 %v364, %v383
    %385 = vdwg.mxu0
    %386 = vmatpush.msra.mxu0 %v88
    %387 = vmatpush.msra.mxu0 %v87
    %388 = vmatpush.msra.mxu0 %v86
    %389 = vmatpush.msra.mxu0 %v85
    %390 = vmatpush.msra.mxu0 %v84
    %391 = vmatpush.msra.mxu0 %v83
    %392 = vmatpush.msra.mxu0 %v82
    %393 = vmatpush.msra.mxu0 %v81
    %394 = vmatpush.msra.mxu0 %v80
    %395 = vmatpush.msra.mxu0 %v79
    %396 = vmatpush.msra.mxu0 %v78
    %397 = vmatpush.msra.mxu0 %v77
    %398 = vmatpush.msra.mxu0 %v76
    %399 = vmatpush.msra.mxu0 %v75
    %400 = vmatpush.msra.mxu0 %v74
    %401 = vmatpush.msra.mxu0 %v73
    %402 = vmatmul.f32.gmra.mxu0 %v295
    %v403 = vpop.f32.mrf.mxu0
    %v404 = vadd.f32 %v384, %v403
    %405 = vdwg.mxu0
    %406 = vmatpush.msra.mxu0 %v104
    %407 = vmatpush.msra.mxu0 %v103
    %408 = vmatpush.msra.mxu0 %v102
    %409 = vmatpush.msra.mxu0 %v101
    %410 = vmatpush.msra.mxu0 %v100
    %411 = vmatpush.msra.mxu0 %v99
    %412 = vmatpush.msra.mxu0 %v98
    %413 = vmatpush.msra.mxu0 %v97
    %414 = vmatpush.msra.mxu0 %v96
    %415 = vmatpush.msra.mxu0 %v95
    %416 = vmatpush.msra.mxu0 %v94
    %417 = vmatpush.msra.mxu0 %v93
    %418 = vmatpush.msra.mxu0 %v92
    %419 = vmatpush.msra.mxu0 %v91
    %420 = vmatpush.msra.mxu0 %v90
    %421 = vmatpush.msra.mxu0 %v89
    %422 = vmatmul.f32.gmra.mxu0 %v296
    %v423 = vpop.f32.mrf.mxu0
    %v424 = vadd.f32 %v404, %v423
    %425 = vdwg.mxu0
    %426 = vmatpush.msra.mxu0 %v120
    %427 = vmatpush.msra.mxu0 %v119
    %428 = vmatpush.msra.mxu0 %v118
    %429 = vmatpush.msra.mxu0 %v117
    %430 = vmatpush.msra.mxu0 %v116
    %431 = vmatpush.msra.mxu0 %v115
    %432 = vmatpush.msra.mxu0 %v114
    %433 = vmatpush.msra.mxu0 %v113
    %434 = vmatpush.msra.mxu0 %v112
    %435 = vmatpush.msra.mxu0 %v111
    %436 = vmatpush.msra.mxu0 %v110
    %437 = vmatpush.msra.mxu0 %v109
    %438 = vmatpush.msra.mxu0 %v108
    %439 = vmatpush.msra.mxu0 %v107
    %440 = vmatpush.msra.mxu0 %v106
    %441 = vmatpush.msra.mxu0 %v105
    %442 = vmatmul.f32.gmra.mxu0 %v297
    %v443 = vpop.f32.mrf.mxu0
    %v444 = vadd.f32 %v424, %v443
    %445 = vdwg.mxu0
    %446 = vmatpush.msra.mxu0 %v136
    %447 = vmatpush.msra.mxu0 %v135
    %448 = vmatpush.msra.mxu0 %v134
    %449 = vmatpush.msra.mxu0 %v133
    %450 = vmatpush.msra.mxu0 %v132
    %451 = vmatpush.msra.mxu0 %v131
    %452 = vmatpush.msra.mxu0 %v130
    %453 = vmatpush.msra.mxu0 %v129
    %454 = vmatpush.msra.mxu0 %v128
    %455 = vmatpush.msra.mxu0 %v127
    %456 = vmatpush.msra.mxu0 %v126
    %457 = vmatpush.msra.mxu0 %v125
    %458 = vmatpush.msra.mxu0 %v124
    %459 = vmatpush.msra.mxu0 %v123
    %460 = vmatpush.msra.mxu0 %v122
    %461 = vmatpush.msra.mxu0 %v121
    %462 = vmatmul.f32.gmra.mxu0 %v298
    %v463 = vpop.f32.mrf.mxu0
    %v464 = vadd.f32 %v444, %v463
    %465 = vdwg.mxu0
    %466 = vmatpush.msra.mxu0 %v152
    %467 = vmatpush.msra.mxu0 %v151
    %468 = vmatpush.msra.mxu0 %v150
    %469 = vmatpush.msra.mxu0 %v149
    %470 = vmatpush.msra.mxu0 %v148
    %471 = vmatpush.msra.mxu0 %v147
    %472 = vmatpush.msra.mxu0 %v146
    %473 = vmatpush.msra.mxu0 %v145
    %474 = vmatpush.msra.mxu0 %v144
    %475 = vmatpush.msra.mxu0 %v143
    %476 = vmatpush.msra.mxu0 %v142
    %477 = vmatpush.msra.mxu0 %v141
    %478 = vmatpush.msra.mxu0 %v140
    %479 = vmatpush.msra.mxu0 %v139
    %480 = vmatpush.msra.mxu0 %v138
    %481 = vmatpush.msra.mxu0 %v137
    %482 = vmatmul.f32.gmra.mxu0 %v299
    %v483 = vpop.f32.mrf.mxu0
    %v484 = vadd.f32 %v464, %v483
    %485 = vdwg.mxu0
    %486 = vmatpush.msra.mxu0 %v168
    %487 = vmatpush.msra.mxu0 %v167
    %488 = vmatpush.msra.mxu0 %v166
    %489 = vmatpush.msra.mxu0 %v165
    %490 = vmatpush.msra.mxu0 %v164
    %491 = vmatpush.msra.mxu0 %v163
    %492 = vmatpush.msra.mxu0 %v162
    %493 = vmatpush.msra.mxu0 %v161
    %494 = vmatpush.msra.mxu0 %v160
    %495 = vmatpush.msra.mxu0 %v159
    %496 = vmatpush.msra.mxu0 %v158
    %497 = vmatpush.msra.mxu0 %v157
    %498 = vmatpush.msra.mxu0 %v156
    %499 = vmatpush.msra.mxu0 %v155
    %500 = vmatpush.msra.mxu0 %v154
    %501 = vmatpush.msra.mxu0 %v153
    %502 = vmatmul.f32.gmra.mxu0 %v302
    %v503 = vpop.f32.mrf.mxu0
    %v504 = vadd.f32 %v484, %v503
    %505 = vdwg.mxu0
    %506 = vmatpush.msra.mxu0 %v184
    %507 = vmatpush.msra.mxu0 %v183
    %508 = vmatpush.msra.mxu0 %v182
    %509 = vmatpush.msra.mxu0 %v181
    %510 = vmatpush.msra.mxu0 %v180
    %511 = vmatpush.msra.mxu0 %v179
    %512 = vmatpush.msra.mxu0 %v178
    %513 = vmatpush.msra.mxu0 %v177
    %514 = vmatpush.msra.mxu0 %v176
    %515 = vmatpush.msra.mxu0 %v175
    %516 = vmatpush.msra.mxu0 %v174
    %517 = vmatpush.msra.mxu0 %v173
    %518 = vmatpush.msra.mxu0 %v172
    %519 = vmatpush.msra.mxu0 %v171
    %520 = vmatpush.msra.mxu0 %v170
    %521 = vmatpush.msra.mxu0 %v169
    %522 = vmatmul.f32.gmra.mxu0 %v303
    %v523 = vpop.f32.mrf.mxu0
    %v524 = vadd.f32 %v504, %v523
    %525 = vdwg.mxu0
    %526 = vmatpush.msra.mxu0 %v200
    %527 = vmatpush.msra.mxu0 %v199
    %528 = vmatpush.msra.mxu0 %v198
    %529 = vmatpush.msra.mxu0 %v197
    %530 = vmatpush.msra.mxu0 %v196
    %531 = vmatpush.msra.mxu0 %v195
    %532 = vmatpush.msra.mxu0 %v194
    %533 = vmatpush.msra.mxu0 %v193
    %534 = vmatpush.msra.mxu0 %v192
    %535 = vmatpush.msra.mxu0 %v191
    %536 = vmatpush.msra.mxu0 %v190
    %537 = vmatpush.msra.mxu0 %v189
    %538 = vmatpush.msra.mxu0 %v188
    %539 = vmatpush.msra.mxu0 %v187
    %540 = vmatpush.msra.mxu0 %v186
    %541 = vmatpush.msra.mxu0 %v185
    %542 = vmatmul.f32.gmra.mxu0 %v304
    %v543 = vpop.f32.mrf.mxu0
    %v544 = vadd.f32 %v524, %v543
    %545 = vdwg.mxu0
    %546 = vmatpush.msra.mxu0 %v216
    %547 = vmatpush.msra.mxu0 %v215
    %548 = vmatpush.msra.mxu0 %v214
    %549 = vmatpush.msra.mxu0 %v213
    %550 = vmatpush.msra.mxu0 %v212
    %551 = vmatpush.msra.mxu0 %v211
    %552 = vmatpush.msra.mxu0 %v210
    %553 = vmatpush.msra.mxu0 %v209
    %554 = vmatpush.msra.mxu0 %v208
    %555 = vmatpush.msra.mxu0 %v207
    %556 = vmatpush.msra.mxu0 %v206
    %557 = vmatpush.msra.mxu0 %v205
    %558 = vmatpush.msra.mxu0 %v204
    %559 = vmatpush.msra.mxu0 %v203
    %560 = vmatpush.msra.mxu0 %v202
    %561 = vmatpush.msra.mxu0 %v201
    %562 = vmatmul.f32.gmra.mxu0 %v305
    %v563 = vpop.f32.mrf.mxu0
    %v564 = vadd.f32 %v544, %v563
    %565 = vdwg.mxu0
    %566 = vmatpush.msra.mxu0 %v232
    %567 = vmatpush.msra.mxu0 %v231
    %568 = vmatpush.msra.mxu0 %v230
    %569 = vmatpush.msra.mxu0 %v229
    %570 = vmatpush.msra.mxu0 %v228
    %571 = vmatpush.msra.mxu0 %v227
    %572 = vmatpush.msra.mxu0 %v226
    %573 = vmatpush.msra.mxu0 %v225
    %574 = vmatpush.msra.mxu0 %v224
    %575 = vmatpush.msra.mxu0 %v223
    %576 = vmatpush.msra.mxu0 %v222
    %577 = vmatpush.msra.mxu0 %v221
    %578 = vmatpush.msra.mxu0 %v220
    %579 = vmatpush.msra.mxu0 %v219
    %580 = vmatpush.msra.mxu0 %v218
    %581 = vmatpush.msra.mxu0 %v217
    %582 = vmatmul.f32.gmra.mxu0 %v306
    %v583 = vpop.f32.mrf.mxu0
    %v584 = vadd.f32 %v564, %v583
    %585 = vdwg.mxu0
    %586 = vmatpush.msra.mxu0 %v248
    %587 = vmatpush.msra.mxu0 %v247
    %588 = vmatpush.msra.mxu0 %v246
    %589 = vmatpush.msra.mxu0 %v245
    %590 = vmatpush.msra.mxu0 %v244
    %591 = vmatpush.msra.mxu0 %v243
    %592 = vmatpush.msra.mxu0 %v242
    %593 = vmatpush.msra.mxu0 %v241
    %594 = vmatpush.msra.mxu0 %v240
    %595 = vmatpush.msra.mxu0 %v239
    %596 = vmatpush.msra.mxu0 %v238
    %597 = vmatpush.msra.mxu0 %v237
    %598 = vmatpush.msra.mxu0 %v236
    %599 = vmatpush.msra.mxu0 %v235
    %600 = vmatpush.msra.mxu0 %v234
    %601 = vmatpush.msra.mxu0 %v233
    %602 = vmatmul.f32.gmra.mxu0 %v307
    %v603 = vpop.f32.mrf.mxu0
    %v604 = vadd.f32 %v584, %v603
    %605 = vdwg.mxu0
    %606 = vmatpush.msra.mxu0 %v264
    %607 = vmatpush.msra.mxu0 %v263
    %608 = vmatpush.msra.mxu0 %v262
    %609 = vmatpush.msra.mxu0 %v261
    %610 = vmatpush.msra.mxu0 %v260
    %611 = vmatpush.msra.mxu0 %v259
    %612 = vmatpush.msra.mxu0 %v258
    %613 = vmatpush.msra.mxu0 %v257
    %614 = vmatpush.msra.mxu0 %v256
    %615 = vmatpush.msra.mxu0 %v255
    %616 = vmatpush.msra.mxu0 %v254
    %617 = vmatpush.msra.mxu0 %v253
    %618 = vmatpush.msra.mxu0 %v252
    %619 = vmatpush.msra.mxu0 %v251
    %620 = vmatpush.msra.mxu0 %v250
    %621 = vmatpush.msra.mxu0 %v249
    %622 = vmatmul.f32.gmra.mxu0 %v308
    %v623 = vpop.f32.mrf.mxu0
    %v624 = vadd.f32 %v604, %v623
    %625 = vdwg.mxu0
    %626 = vmatpush.msra.mxu0 %v280
    %627 = vmatpush.msra.mxu0 %v279
    %628 = vmatpush.msra.mxu0 %v278
    %629 = vmatpush.msra.mxu0 %v277
    %630 = vmatpush.msra.mxu0 %v276
    %631 = vmatpush.msra.mxu0 %v275
    %632 = vmatpush.msra.mxu0 %v274
    %633 = vmatpush.msra.mxu0 %v273
    %634 = vmatpush.msra.mxu0 %v272
    %635 = vmatpush.msra.mxu0 %v271
    %636 = vmatpush.msra.mxu0 %v270
    %637 = vmatpush.msra.mxu0 %v269
    %638 = vmatpush.msra.mxu0 %v268
    %639 = vmatpush.msra.mxu0 %v267
    %640 = vmatpush.msra.mxu0 %v266
    %641 = vmatpush.msra.mxu0 %v265
    %642 = vmatmul.f32.gmra.mxu0 %v309
    %v643 = vpop.f32.mrf.mxu0
    %v644 = vadd.f32 %v624, %v643
    %645 = vdwg.mxu0
    %v646 = vmax.f32 %v644, 0.0
    %v647 = vld [vmem:[%s3] sm:$0xff]
    %v648 = vld [vmem:[%s3 + $0x8] sm:$0xff]
    %v649 = vld [vmem:[%s3 + $0x10] sm:$0xff]
    %v650 = vld [vmem:[%s3 + $0x18] sm:$0xff]
    %v651 = vld [vmem:[%s3 + $0x20] sm:$0xff]
    %v652 = vld [vmem:[%s3 + $0x28] sm:$0xff]
    %v653 = vld [vmem:[%s3 + $0x30] sm:$0xff]
    %v654 = vld [vmem:[%s3 + $0x38] sm:$0xff]
    %v655 = vld [vmem:[%s3 + $0x40] sm:$0xff]
    %v656 = vld [vmem:[%s3 + $0x48] sm:$0xff]
    %v657 = vld [vmem:[%s3 + $0x50] sm:$0xff]
    %v658 = vld [vmem:[%s3 + $0x58] sm:$0xff]
    %v659 = vld [vmem:[%s3 + $0x60] sm:$0xff]
    %v660 = vld [vmem:[%s3 + $0x68] sm:$0xff]
    %v661 = vld [vmem:[%s3 + $0x70] sm:$0xff]
    %v662 = vld [vmem:[%s3 + $0x78] sm:$0xff]
    %v663 = vld [vmem:[%s4] sm:$0x1]
    %v665 = vperm.slane %v663, 0
    %667 = vmatpush.msra.mxu0 %v662
    %668 = vmatpush.msra.mxu0 %v661
    %669 = vmatpush.msra.mxu0 %v660
    %670 = vmatpush.msra.mxu0 %v659
    %671 = vmatpush.msra.mxu0 %v658
    %672 = vmatpush.msra.mxu0 %v657
    %673 = vmatpush.msra.mxu0 %v656
    %674 = vmatpush.msra.mxu0 %v655
    %675 = vmatpush.msra.mxu0 %v654
    %676 = vmatpush.msra.mxu0 %v653
    %677 = vmatpush.msra.mxu0 %v652
    %678 = vmatpush.msra.mxu0 %v651
    %679 = vmatpush.msra.mxu0 %v650
    %680 = vmatpush.msra.mxu0 %v649
    %681 = vmatpush.msra.mxu0 %v648
    %682 = vmatpush.msra.mxu0 %v647
    %683 = vmatmul.f32.gmra.mxu0 %v646
    %v684 = vpop.f32.mrf.mxu0
    %v685 = vadd.f32 %v665, %v684
    %686 = vdwg.mxu0
    %vm687 = vcmask 1041408
    %v688 = vsel %vm687, %v685, -inf
    %689 = vmax.xlane.f32.xlu0 %v688
    %v690 = vpop.xlane.xlu0 %689
    %v691 = vsub.f32 %v685, %v690
    %v692 = vmul.f32 %v691, 1.442695
    %v693 = vpow.pop %v692
    %v694 = vsel %vm687, %v693, 0.0
    %695 = vadd.xlane.f32.xlu0 %v694
    %v696 = vpop.xlane.xlu0 %695
    %v697 = vlog2.pop %v696
    %v698 = vmul.f32 %v697, 0.6931472
    %v699 = vsub.f32 %v691, %v698
    %700 = vst [vmem:[#allocation2] sm:$0x3] %v699
    // Predicated region
    $region22: #{mnist_classifier_forward.5} parent=1 // pred_check
      _
    $region23: #{mnist_classifier_forward.5} parent=1 // pred_check_branch
      %702 = sbr.rel (0) target = $region25
    $region24: #{mnist_classifier_forward.5} parent=1 // pred_region
      %704 = vsyncadd [#allocation3], 0
      %s706 = sshll.u32 [#allocation2], 4
      %s707 = int_to_ptr.vmem [resolvable:$true] %s706
      %s708 = sshll.u32 %s5, 4
      %s709 = int_to_ptr.hbm [resolvable:$true] %s708
      %711 = dma.vmem_to_hbm [thread:$0]  %s707, 32, %s709, [#allocation3]
    $region25: #{mnist_classifier_forward.5} parent=1 // pred_fallthru
      _
    // Predicated region
    $region26: #{mnist_classifier_forward.5} parent=1 // pred_check
      _
    $region27: #{mnist_classifier_forward.5} parent=1 // pred_check_branch
      %713 = sbr.rel (0) target = $region29
    $region28: #{mnist_classifier_forward.5} parent=1 // pred_region
      %715 = dma.done [#allocation3], 32
    $region29: #{mnist_classifier_forward.5} parent=1 // pred_fallthru
      _
    %716 = vsyncpa [#allocation3], 1

</llo_original>
